<compile_context>
chip_gen: v5e
topology: v5e:2x2
jax: 0.10.0
libtpu: 0.0.40
codegen_flags: <defaults>
</compile_context>

<pallas_src>
import jax
import jax.numpy as jnp
from jax.experimental import pallas as pl
from jax.experimental.pallas import tpu as pltpu

IN_DIM = 28 * 28          # 784
H1, H2, OUT_DIM = 500, 200, 10
# Lane-aligned (multiple-of-128) padded dims used inside the kernel.
H1P, H2P, OUTP = 512, 256, 128


def _round_up(x, m):
    return (x + m - 1) // m * m


def _sigmoid(x):
    # sigmoid(x) = 0.5*(tanh(x/2)+1): a single EUP transcendental plus cheap
    # VPU mul/add (vs. exp + divide in the naive form).
    return 0.5 * (jnp.tanh(0.5 * x) + 1.0)


def mlp_kernel(x_ref, w1_ref, b1_ref, w2_ref, b2_ref, w3_ref, b3_ref, o_ref):
    # x: (TB, 784) f32.  Weights are bf16, lane-padded; biases f32, lane-padded.
    x = x_ref[...].astype(jnp.bfloat16)   # mirrors x.float(); bf16 operands for MXU

    h1 = jnp.dot(x, w1_ref[...], preferred_element_type=jnp.float32) + b1_ref[...]
    h1 = _sigmoid(h1).astype(jnp.bfloat16)

    h2 = jnp.dot(h1, w2_ref[...], preferred_element_type=jnp.float32) + b2_ref[...]
    h2 = _sigmoid(h2).astype(jnp.bfloat16)

    h3 = jnp.dot(h2, w3_ref[...], preferred_element_type=jnp.float32) + b3_ref[...]
    o_ref[...] = _sigmoid(h3)


def prepare_params(params):
    """Zero-pad to lane-aligned shapes; weights to bf16, biases stay f32."""
    def pad2(a, r, c):
        return jnp.pad(a, ((0, r - a.shape[0]), (0, c - a.shape[1])))

    w1 = pad2(params["w1"], IN_DIM, H1P).astype(jnp.bfloat16)
    w2 = pad2(params["w2"], H1P, H2P).astype(jnp.bfloat16)   # padded rows are zero
    w3 = pad2(params["w3"], H2P, OUTP).astype(jnp.bfloat16)  # padded rows are zero
    b1 = pad2(params["b1"], 1, H1P).astype(jnp.float32)
    b2 = pad2(params["b2"], 1, H2P).astype(jnp.float32)
    b3 = pad2(params["b3"], 1, OUTP).astype(jnp.float32)
    return w1, b1, w2, b2, w3, b3


def mnist_fc_forward(x, params, *, tile_b=None):
    """x: (B, 784).  params: dict of w1,b1,w2,b2,w3,b3 in (in, out) layout."""
    x = x.astype(jnp.float32)            # x.float() from the PyTorch forward
    B = x.shape[0]
    if tile_b is None:
        # Big batch tile keeps the MXU busy; 256x784 f32 (~0.8 MiB) x 2 buffers
        # plus ~2.3 MiB of double-buffered bf16 weights fits comfortably under
        # the scoped-VMEM defaults on v5e (16 MiB), v6e (32 MiB) and v7x (32 MiB).
        tile_b = min(256, _round_up(B, 8))
    Bp = _round_up(B, tile_b)
    if Bp != B:
        x = jnp.pad(x, ((0, Bp - B), (0, 0)))

    w1, b1, w2, b2, w3, b3 = prepare_params(params)

    grid = (Bp // tile_b,)
    const = lambda shape: pl.BlockSpec(shape, lambda i: (0, 0))

    flops = 2 * Bp * (IN_DIM * H1P + H1P * H2P + H2P * OUTP)
    transcendentals = Bp * (H1P + H2P + OUTP)
    bytes_accessed = (
        Bp * IN_DIM * 4                              # x
        + (w1.size + w2.size + w3.size) * 2          # bf16 weights
        + (b1.size + b2.size + b3.size) * 4          # f32 biases
        + Bp * OUTP * 4                              # output
    )

    out = pl.pallas_call(
        mlp_kernel,
        out_shape=jax.ShapeDtypeStruct((Bp, OUTP), jnp.float32),
        grid_spec=pltpu.PrefetchScalarGridSpec(
            num_scalar_prefetch=0,
            grid=grid,
            in_specs=[
                pl.BlockSpec((tile_b, IN_DIM), lambda i: (i, 0)),   # x tile
                const((IN_DIM, H1P)),                               # w1
                const((1, H1P)),                                    # b1
                const((H1P, H2P)),                                  # w2
                const((1, H2P)),                                    # b2
                const((H2P, OUTP)),                                 # w3
                const((1, OUTP)),                                   # b3
            ],
            out_specs=pl.BlockSpec((tile_b, OUTP), lambda i: (i, 0)),
        ),
        compiler_params=pltpu.CompilerParams(
            dimension_semantics=("parallel",),       # shards grid steps across TCs on v7x
        ),
        cost_estimate=pl.CostEstimate(
            flops=flops,
            transcendentals=transcendentals,
            bytes_accessed=bytes_accessed,
        ),
    )(x, w1, b1, w2, b2, w3, b3)

    # Drop batch padding and the padded output lanes (128 -> 10).
    return out[:B, :OUT_DIM]


def init_params(key):
    """Deterministic init matching nn.Linear shapes (stored transposed, f32)."""
    k1, k2, k3, k4, k5, k6 = jax.random.split(key, 6)

    def uniform(k, shape, fan_in):
        bound = 1.0 / jnp.sqrt(fan_in)
        return jax.random.uniform(k, shape, jnp.float32, -bound, bound)

    return {
        "w1": uniform(k1, (IN_DIM, H1), IN_DIM),
        "b1": uniform(k2, (1, H1), IN_DIM),
        "w2": uniform(k3, (H1, H2), H1),
        "b2": uniform(k4, (1, H2), H1),
        "w3": uniform(k5, (H2, OUT_DIM), H2),
        "b3": uniform(k6, (1, OUT_DIM), H2),
    }


def reference_forward(x, params):
    h1 = jax.nn.sigmoid(x.astype(jnp.float32) @ params["w1"] + params["b1"])
    h2 = jax.nn.sigmoid(h1 @ params["w2"] + params["b2"])
    return jax.nn.sigmoid(h2 @ params["w3"] + params["b3"])


if __name__ == "__main__":
    key = jax.random.PRNGKey(0)
    pkey, xkey = jax.random.split(key)

    params = init_params(pkey)
    batch = 64
    x = jax.random.normal(xkey, (batch, IN_DIM), dtype=jnp.float32)

    out = jax.block_until_ready(mnist_fc_forward(x, params))

    ref = reference_forward(x, params)
    assert out.shape == (batch, OUT_DIM)
    # bf16 MXU operands with f32 accumulation -> compare loosely vs f32 reference.
    assert jnp.allclose(out, ref, atol=2e-2, rtol=0.0), "mismatch vs reference"

    print("KERNEL_OK")
</pallas_src>

<mosaic_0001>
module attributes {stable_mosaic.version = 11 : i64} {
  func.func @mlp_kernel(%arg0: i32, %arg1: memref<64x784xf32, #tpu.memory_space<vmem>>, %arg2: memref<784x512xbf16, #tpu.memory_space<vmem>>, %arg3: memref<1x512xf32, #tpu.memory_space<vmem>>, %arg4: memref<512x256xbf16, #tpu.memory_space<vmem>>, %arg5: memref<1x256xf32, #tpu.memory_space<vmem>>, %arg6: memref<256x128xbf16, #tpu.memory_space<vmem>>, %arg7: memref<1x128xf32, #tpu.memory_space<vmem>>, %arg8: memref<64x128xf32, #tpu.memory_space<vmem>>) attributes {dimension_semantics = [#tpu.dimension_semantics<parallel>], iteration_bounds = array<i64: 1>, scalar_prefetch = 0 : i64, scratch_operands = 0 : i64, tpu.core_type = #tpu.core_type<tc>, window_params = [{transform_indices = @transform_0, window_bounds = array<i64: 64, 784>}, {pipeline_mode = #tpu.pipeline_mode<synchronous>, transform_indices = @transform_1, window_bounds = array<i64: 784, 512>}, {pipeline_mode = #tpu.pipeline_mode<synchronous>, transform_indices = @transform_2, window_bounds = array<i64: 1, 512>}, {pipeline_mode = #tpu.pipeline_mode<synchronous>, transform_indices = @transform_3, window_bounds = array<i64: 512, 256>}, {pipeline_mode = #tpu.pipeline_mode<synchronous>, transform_indices = @transform_4, window_bounds = array<i64: 1, 256>}, {pipeline_mode = #tpu.pipeline_mode<synchronous>, transform_indices = @transform_5, window_bounds = array<i64: 256, 128>}, {pipeline_mode = #tpu.pipeline_mode<synchronous>, transform_indices = @transform_6, window_bounds = array<i64: 1, 128>}, {transform_indices = @transform_7, window_bounds = array<i64: 64, 128>}]} {
    %c0 = arith.constant 0 : index
    %c0_0 = arith.constant 0 : index
    %0 = vector.load %arg1[%c0, %c0_0] : memref<64x784xf32, #tpu.memory_space<vmem>>, vector<64x784xf32>
    %1 = arith.truncf %0 : vector<64x784xf32> to vector<64x784xbf16>
    %c0_1 = arith.constant 0 : index
    %c0_2 = arith.constant 0 : index
    %2 = vector.load %arg2[%c0_1, %c0_2] : memref<784x512xbf16, #tpu.memory_space<vmem>>, vector<784x512xbf16>
    %cst = arith.constant dense<0.000000e+00> : vector<64x512xf32>
    %3 = tpu.matmul %1, %2, %cst {dimension_numbers = #tpu.dot_dimension_numbers<[1], [0], [0], [1], [0, 0, 1, 1], [], []>} : vector<64x784xbf16>, vector<784x512xbf16>, vector<64x512xf32> -> vector<64x512xf32>
    %c0_3 = arith.constant 0 : index
    %c0_4 = arith.constant 0 : index
    %4 = vector.load %arg3[%c0_3, %c0_4] : memref<1x512xf32, #tpu.memory_space<vmem>>, vector<1x512xf32>
    %5 = vector.broadcast %4 : vector<1x512xf32> to vector<64x512xf32>
    %6 = arith.addf %3, %5 : vector<64x512xf32>
    %cst_5 = arith.constant 5.000000e-01 : f32
    %7 = vector.broadcast %cst_5 : f32 to vector<64x512xf32>
    %8 = arith.mulf %7, %6 : vector<64x512xf32>
    %9 = math.tanh %8 : vector<64x512xf32>
    %cst_6 = arith.constant 1.000000e+00 : f32
    %10 = vector.broadcast %cst_6 : f32 to vector<64x512xf32>
    %11 = arith.addf %9, %10 : vector<64x512xf32>
    %cst_7 = arith.constant 5.000000e-01 : f32
    %12 = vector.broadcast %cst_7 : f32 to vector<64x512xf32>
    %13 = arith.mulf %12, %11 : vector<64x512xf32>
    %14 = arith.truncf %13 : vector<64x512xf32> to vector<64x512xbf16>
    %c0_8 = arith.constant 0 : index
    %c0_9 = arith.constant 0 : index
    %15 = vector.load %arg4[%c0_8, %c0_9] : memref<512x256xbf16, #tpu.memory_space<vmem>>, vector<512x256xbf16>
    %cst_10 = arith.constant dense<0.000000e+00> : vector<64x256xf32>
    %16 = tpu.matmul %14, %15, %cst_10 {dimension_numbers = #tpu.dot_dimension_numbers<[1], [0], [0], [1], [0, 0, 1, 1], [], []>} : vector<64x512xbf16>, vector<512x256xbf16>, vector<64x256xf32> -> vector<64x256xf32>
    %c0_11 = arith.constant 0 : index
    %c0_12 = arith.constant 0 : index
    %17 = vector.load %arg5[%c0_11, %c0_12] : memref<1x256xf32, #tpu.memory_space<vmem>>, vector<1x256xf32>
    %18 = vector.broadcast %17 : vector<1x256xf32> to vector<64x256xf32>
    %19 = arith.addf %16, %18 : vector<64x256xf32>
    %cst_13 = arith.constant 5.000000e-01 : f32
    %20 = vector.broadcast %cst_13 : f32 to vector<64x256xf32>
    %21 = arith.mulf %20, %19 : vector<64x256xf32>
    %22 = math.tanh %21 : vector<64x256xf32>
    %cst_14 = arith.constant 1.000000e+00 : f32
    %23 = vector.broadcast %cst_14 : f32 to vector<64x256xf32>
    %24 = arith.addf %22, %23 : vector<64x256xf32>
    %cst_15 = arith.constant 5.000000e-01 : f32
    %25 = vector.broadcast %cst_15 : f32 to vector<64x256xf32>
    %26 = arith.mulf %25, %24 : vector<64x256xf32>
    %27 = arith.truncf %26 : vector<64x256xf32> to vector<64x256xbf16>
    %c0_16 = arith.constant 0 : index
    %c0_17 = arith.constant 0 : index
    %28 = vector.load %arg6[%c0_16, %c0_17] : memref<256x128xbf16, #tpu.memory_space<vmem>>, vector<256x128xbf16>
    %cst_18 = arith.constant dense<0.000000e+00> : vector<64x128xf32>
    %29 = tpu.matmul %27, %28, %cst_18 {dimension_numbers = #tpu.dot_dimension_numbers<[1], [0], [0], [1], [0, 0, 1, 1], [], []>} : vector<64x256xbf16>, vector<256x128xbf16>, vector<64x128xf32> -> vector<64x128xf32>
    %c0_19 = arith.constant 0 : index
    %c0_20 = arith.constant 0 : index
    %30 = vector.load %arg7[%c0_19, %c0_20] : memref<1x128xf32, #tpu.memory_space<vmem>>, vector<1x128xf32>
    %31 = vector.broadcast %30 : vector<1x128xf32> to vector<64x128xf32>
    %32 = arith.addf %29, %31 : vector<64x128xf32>
    %cst_21 = arith.constant 5.000000e-01 : f32
    %33 = vector.broadcast %cst_21 : f32 to vector<64x128xf32>
    %34 = arith.mulf %33, %32 : vector<64x128xf32>
    %35 = math.tanh %34 : vector<64x128xf32>
    %cst_22 = arith.constant 1.000000e+00 : f32
    %36 = vector.broadcast %cst_22 : f32 to vector<64x128xf32>
    %37 = arith.addf %35, %36 : vector<64x128xf32>
    %cst_23 = arith.constant 5.000000e-01 : f32
    %38 = vector.broadcast %cst_23 : f32 to vector<64x128xf32>
    %39 = arith.mulf %38, %37 : vector<64x128xf32>
    %c0_24 = arith.constant 0 : index
    %c0_25 = arith.constant 0 : index
    %40 = vector.load %arg8[%c0_24, %c0_25] : memref<64x128xf32, #tpu.memory_space<vmem>>, vector<64x128xf32>
    tpu.vector_store %arg8[%c0_24, %c0_25], %39 {strides = array<i32>} : memref<64x128xf32, #tpu.memory_space<vmem>>, vector<64x128xf32>,
    return
  }
  func.func @transform_0(%arg0: i32) -> (i32, i32) {
    %c0_i32 = arith.constant 0 : i32
    %c0_i32_0 = arith.constant 0 : i32
    return %arg0, %c0_i32 : i32, i32
  }
  func.func @transform_1(%arg0: i32) -> (i32, i32) {
    %c0_i32 = arith.constant 0 : i32
    %c0_i32_0 = arith.constant 0 : i32
    %c0_i32_1 = arith.constant 0 : i32
    return %c0_i32, %c0_i32_0 : i32, i32
  }
  func.func @transform_2(%arg0: i32) -> (i32, i32) {
    %c0_i32 = arith.constant 0 : i32
    %c0_i32_0 = arith.constant 0 : i32
    %c0_i32_1 = arith.constant 0 : i32
    return %c0_i32, %c0_i32_0 : i32, i32
  }
  func.func @transform_3(%arg0: i32) -> (i32, i32) {
    %c0_i32 = arith.constant 0 : i32
    %c0_i32_0 = arith.constant 0 : i32
    %c0_i32_1 = arith.constant 0 : i32
    return %c0_i32, %c0_i32_0 : i32, i32
  }
  func.func @transform_4(%arg0: i32) -> (i32, i32) {
    %c0_i32 = arith.constant 0 : i32
    %c0_i32_0 = arith.constant 0 : i32
    %c0_i32_1 = arith.constant 0 : i32
    return %c0_i32, %c0_i32_0 : i32, i32
  }
  func.func @transform_5(%arg0: i32) -> (i32, i32) {
    %c0_i32 = arith.constant 0 : i32
    %c0_i32_0 = arith.constant 0 : i32
    %c0_i32_1 = arith.constant 0 : i32
    return %c0_i32, %c0_i32_0 : i32, i32
  }
  func.func @transform_6(%arg0: i32) -> (i32, i32) {
    %c0_i32 = arith.constant 0 : i32
    %c0_i32_0 = arith.constant 0 : i32
    %c0_i32_1 = arith.constant 0 : i32
    return %c0_i32, %c0_i32_0 : i32, i32
  }
  func.func @transform_7(%arg0: i32) -> (i32, i32) {
    %c0_i32 = arith.constant 0 : i32
    %c0_i32_0 = arith.constant 0 : i32
    return %arg0, %c0_i32 : i32, i32
  }
}

</mosaic_0001>

<llo_original>
// kernel: tpu_custom_call.1
$region0: #{tpu_custom_call.1}
  #allocation0 [shape = 'u32[]', space=smem, size = 0x4, offset = 0x4, fixed_abs, tag = 'smem constant byte address 0x4 - core index']
  #allocation1 [shape = 'u32[72,128]{1,0:T(1,128)}', space=vmem, size = 0x9000, scoped, tag = 'internal scratch']
  %s0 = inlined_call_operand.hbm [shape: f32[64,784], index: 0, kind: input, shape index: {}]
  %s1 = inlined_call_operand.hbm [shape: bf16[784,512], index: 1, kind: input, shape index: {}]
  %s2 = inlined_call_operand.hbm [shape: f32[1,512], index: 2, kind: input, shape index: {}]
  %s3 = inlined_call_operand.hbm [shape: bf16[512,256], index: 3, kind: input, shape index: {}]
  %s4 = inlined_call_operand.vmem [shape: f32[1,256], index: 4, kind: input, shape index: {}]
  %s5 = inlined_call_operand.hbm [shape: bf16[256,128], index: 5, kind: input, shape index: {}]
  %s6 = inlined_call_operand.vmem [shape: f32[1,128], index: 6, kind: input, shape index: {}]
  %s7 = inlined_call_operand.hbm [shape: f32[64,128], index: 7, kind: output, shape index: {}]
  %s8 = sld [smem:[#allocation0]]
  $region58: #{tpu_custom_call.1} parent=0
    _
  %s10 = ssub.s32 1, %s8
  %s11 = scalar_select 0, %s10, %s8
  $region1: #{tpu_custom_call.1} parent=0
    #allocation2 [shape = 'u8[229376]{0}', space=vmem, size = 0x38000, scoped, tag = 'input window, operand 0, single buffered']
    #allocation3 [shape = 's32[1]{0}', space=sflag, size = 0x4, scoped, tag = 'scoped memory for tpu_custom_call.1']
    #allocation4 [shape = 's32[1]{0}', space=sflag, size = 0x4, scoped, tag = 'scoped memory for tpu_custom_call.1']
    #allocation5 [shape = 'u8[802816]{0}', space=vmem, size = 0xc4000, scoped, tag = 'input window, operand 1, single buffered']
    #allocation6 [shape = 's32[1]{0}', space=sflag, size = 0x4, scoped, tag = 'scoped memory for tpu_custom_call.1']
    #allocation7 [shape = 'u8[2048]{0}', space=vmem, size = 0x800, scoped, tag = 'input window, operand 2, single buffered']
    #allocation8 [shape = 'u8[262144]{0}', space=vmem, size = 0x40000, scoped, tag = 'input window, operand 3, single buffered']
    #allocation9 [shape = 's32[1]{0}', space=sflag, size = 0x4, scoped, tag = 'scoped memory for tpu_custom_call.1']
    #allocation10 [shape = 'u8[65536]{0}', space=vmem, size = 0x10000, scoped, tag = 'input window, operand 5, single buffered']
    #allocation11 [shape = 'u8[32768]{0}', space=vmem, size = 0x8000, scoped, tag = 'output window, operand 0, single buffered']
    %12 = vsyncpa [#allocation3], 0
    %13 = vsyncpa [#allocation6], 0
    %14 = vsyncpa [#allocation9], 0
    %15 = vsyncpa [#allocation4], 0
    // Predicated region
    $region2: #{tpu_custom_call.1} parent=1 // pred_check
      _
    $region3: #{tpu_custom_call.1} parent=1 // pred_check_branch
      %17 = sbr.rel (0) target = $region5
    $region4: #{tpu_custom_call.1} parent=1 // pred_region
      %19 = vsyncadd [#allocation3], 0
      %s20 = sshll.u32 %s0, 4
      %s21 = int_to_ptr.hbm [resolvable:$true] %s20
      %s22 = sshll.u32 [#allocation2], 4
      %s23 = int_to_ptr.vmem [resolvable:$true] %s22
      %28 = dma.hbm_to_vmem [thread:$0]  %s21, 7168, %s23, [#allocation3], 896, 896, 56
    $region5: #{tpu_custom_call.1} parent=1 // pred_fallthru
      _
    // Predicated region
    $region6: #{tpu_custom_call.1} parent=1 // pred_check
      _
    $region7: #{tpu_custom_call.1} parent=1 // pred_check_branch
      %30 = sbr.rel (0) target = $region9
    $region8: #{tpu_custom_call.1} parent=1 // pred_region
      %32 = vsyncadd [#allocation6], 0
      %s33 = sshll.u32 %s1, 4
      %s34 = int_to_ptr.hbm [resolvable:$true] %s33
      %s35 = sshll.u32 [#allocation5], 4
      %s36 = int_to_ptr.vmem [resolvable:$true] %s35
      %41 = dma.hbm_to_vmem [thread:$0]  %s34, 25088, %s36, [#allocation6], 256, 256, 16
    $region9: #{tpu_custom_call.1} parent=1 // pred_fallthru
      _
    // Predicated region
    $region10: #{tpu_custom_call.1} parent=1 // pred_check
      _
    $region11: #{tpu_custom_call.1} parent=1 // pred_check_branch
      %43 = sbr.rel (0) target = $region13
    $region12: #{tpu_custom_call.1} parent=1 // pred_region
      %45 = vsyncadd [#allocation6], 0
      %s47 = sshll.u32 %s2, 4
      %s48 = int_to_ptr.hbm [resolvable:$true] %s47
      %s49 = sshll.u32 [#allocation7], 4
      %s50 = int_to_ptr.vmem [resolvable:$true] %s49
      %52 = dma.hbm_to_vmem [thread:$0]  %s48, 64, %s50, [#allocation6]
    $region13: #{tpu_custom_call.1} parent=1 // pred_fallthru
      _
    // Predicated region
    $region14: #{tpu_custom_call.1} parent=1 // pred_check
      _
    $region15: #{tpu_custom_call.1} parent=1 // pred_check_branch
      %54 = sbr.rel (0) target = $region17
    $region16: #{tpu_custom_call.1} parent=1 // pred_region
      %56 = vsyncadd [#allocation9], 0
      %s57 = sshll.u32 %s3, 4
      %s58 = int_to_ptr.hbm [resolvable:$true] %s57
      %s59 = sshll.u32 [#allocation8], 4
      %s60 = int_to_ptr.vmem [resolvable:$true] %s59
      %65 = dma.hbm_to_vmem [thread:$0]  %s58, 8192, %s60, [#allocation9], 128, 128, 8
    $region17: #{tpu_custom_call.1} parent=1 // pred_fallthru
      _
    // Predicated region
    $region18: #{tpu_custom_call.1} parent=1 // pred_check
      _
    $region19: #{tpu_custom_call.1} parent=1 // pred_check_branch
      %67 = sbr.rel (0) target = $region21
    $region20: #{tpu_custom_call.1} parent=1 // pred_region
      _
    $region21: #{tpu_custom_call.1} parent=1 // pred_fallthru
      _
    // Predicated region
    $region22: #{tpu_custom_call.1} parent=1 // pred_check
      _
    $region23: #{tpu_custom_call.1} parent=1 // pred_check_branch
      %69 = sbr.rel (0) target = $region25
    $region24: #{tpu_custom_call.1} parent=1 // pred_region
      %71 = vsyncadd [#allocation9], 0
      %s72 = sshll.u32 %s5, 4
      %s73 = int_to_ptr.hbm [resolvable:$true] %s72
      %s74 = sshll.u32 [#allocation10], 4
      %s75 = int_to_ptr.vmem [resolvable:$true] %s74
      %80 = dma.hbm_to_vmem [thread:$0]  %s73, 2048, %s75, [#allocation9], 64, 64, 4
    $region25: #{tpu_custom_call.1} parent=1 // pred_fallthru
      _
    // Predicated region
    $region26: #{tpu_custom_call.1} parent=1 // pred_check
      _
    $region27: #{tpu_custom_call.1} parent=1 // pred_check_branch
      %82 = sbr.rel (0) target = $region29
    $region28: #{tpu_custom_call.1} parent=1 // pred_region
      _
    $region29: #{tpu_custom_call.1} parent=1 // pred_fallthru
      _
    // Predicated region
    $region30: #{tpu_custom_call.1} parent=1 // pred_check
      _
    $region31: #{tpu_custom_call.1} parent=1 // pred_check_branch
      %84 = sbr.rel (0) target = $region33
    $region32: #{tpu_custom_call.1} parent=1 // pred_region
      %86 = dma.done [#allocation3], 7168
    $region33: #{tpu_custom_call.1} parent=1 // pred_fallthru
      _
    // Predicated region
    $region34: #{tpu_custom_call.1} parent=1 // pred_check
      _
    $region35: #{tpu_custom_call.1} parent=1 // pred_check_branch
      %88 = sbr.rel (0) target = $region37
    $region36: #{tpu_custom_call.1} parent=1 // pred_region
      %90 = dma.done [#allocation6], 25088
    $region37: #{tpu_custom_call.1} parent=1 // pred_fallthru
      _
    // Predicated region
    $region38: #{tpu_custom_call.1} parent=1 // pred_check
      _
    $region39: #{tpu_custom_call.1} parent=1 // pred_check_branch
      %92 = sbr.rel (0) target = $region41
    $region40: #{tpu_custom_call.1} parent=1 // pred_region
      %94 = dma.done [#allocation6], 64
    $region41: #{tpu_custom_call.1} parent=1 // pred_fallthru
      _
    // Predicated region
    $region42: #{tpu_custom_call.1} parent=1 // pred_check
      _
    $region43: #{tpu_custom_call.1} parent=1 // pred_check_branch
      %96 = sbr.rel (0) target = $region45
    $region44: #{tpu_custom_call.1} parent=1 // pred_region
      %98 = dma.done [#allocation9], 8192
    $region45: #{tpu_custom_call.1} parent=1 // pred_fallthru
      _
    // Predicated region
    $region46: #{tpu_custom_call.1} parent=1 // pred_check
      _
    $region47: #{tpu_custom_call.1} parent=1 // pred_check_branch
      %100 = sbr.rel (0) target = $region49
    $region48: #{tpu_custom_call.1} parent=1 // pred_region
      %102 = dma.done [#allocation9], 2048
    $region49: #{tpu_custom_call.1} parent=1 // pred_fallthru
      _
    %v104 = vld [vmem:[#allocation2] sm:$0xff]
    %v105 = vld [vmem:[#allocation2 + $0x8] sm:$0xff]
    %v106 = vld [vmem:[#allocation2 + $0x10] sm:$0xff]
    %v107 = vld [vmem:[#allocation2 + $0x18] sm:$0xff]
    %v108 = vld [vmem:[#allocation2 + $0x20] sm:$0xff]
    %v109 = vld [vmem:[#allocation2 + $0x28] sm:$0xff]
    %v110 = vld [vmem:[#allocation2 + $0x30] sm:$0xff]
    %v111 = vld [vmem:[#allocation2 + $0x38] sm:$0xff]
    %v112 = vld [vmem:[#allocation2 + $0x40] sm:$0xff]
    %v113 = vld [vmem:[#allocation2 + $0x48] sm:$0xff]
    %v114 = vld [vmem:[#allocation2 + $0x50] sm:$0xff]
    %v115 = vld [vmem:[#allocation2 + $0x58] sm:$0xff]
    %v116 = vld [vmem:[#allocation2 + $0x60] sm:$0xff]
    %v117 = vld [vmem:[#allocation2 + $0x68] sm:$0xff]
    %v118 = vld [vmem:[#allocation2 + $0x70] sm:$0xff]
    %v119 = vld [vmem:[#allocation2 + $0x78] sm:$0xff]
    %v120 = vld [vmem:[#allocation2 + $0x80] sm:$0xff]
    %v121 = vld [vmem:[#allocation2 + $0x88] sm:$0xff]
    %v122 = vld [vmem:[#allocation2 + $0x90] sm:$0xff]
    %v123 = vld [vmem:[#allocation2 + $0x98] sm:$0xff]
    %v124 = vld [vmem:[#allocation2 + $0xa0] sm:$0xff]
    %v125 = vld [vmem:[#allocation2 + $0xa8] sm:$0xff]
    %v126 = vld [vmem:[#allocation2 + $0xb0] sm:$0xff]
    %v127 = vld [vmem:[#allocation2 + $0xb8] sm:$0xff]
    %v128 = vld [vmem:[#allocation2 + $0xc0] sm:$0xff]
    %v129 = vld [vmem:[#allocation2 + $0xc8] sm:$0xff]
    %v130 = vld [vmem:[#allocation2 + $0xd0] sm:$0xff]
    %v131 = vld [vmem:[#allocation2 + $0xd8] sm:$0xff]
    %v132 = vld [vmem:[#allocation2 + $0xe0] sm:$0xff]
    %v133 = vld [vmem:[#allocation2 + $0xe8] sm:$0xff]
    %v134 = vld [vmem:[#allocation2 + $0xf0] sm:$0xff]
    %v135 = vld [vmem:[#allocation2 + $0xf8] sm:$0xff]
    %v136 = vld [vmem:[#allocation2 + $0x100] sm:$0xff]
    %v137 = vld [vmem:[#allocation2 + $0x108] sm:$0xff]
    %v138 = vld [vmem:[#allocation2 + $0x110] sm:$0xff]
    %v139 = vld [vmem:[#allocation2 + $0x118] sm:$0xff]
    %v140 = vld [vmem:[#allocation2 + $0x120] sm:$0xff]
    %v141 = vld [vmem:[#allocation2 + $0x128] sm:$0xff]
    %v142 = vld [vmem:[#allocation2 + $0x130] sm:$0xff]
    %v143 = vld [vmem:[#allocation2 + $0x138] sm:$0xff]
    %v144 = vld [vmem:[#allocation2 + $0x140] sm:$0xff]
    %v145 = vld [vmem:[#allocation2 + $0x148] sm:$0xff]
    %v146 = vld [vmem:[#allocation2 + $0x150] sm:$0xff]
    %v147 = vld [vmem:[#allocation2 + $0x158] sm:$0xff]
    %v148 = vld [vmem:[#allocation2 + $0x160] sm:$0xff]
    %v149 = vld [vmem:[#allocation2 + $0x168] sm:$0xff]
    %v150 = vld [vmem:[#allocation2 + $0x170] sm:$0xff]
    %v151 = vld [vmem:[#allocation2 + $0x178] sm:$0xff]
    %v152 = vld [vmem:[#allocation2 + $0x180] sm:$0xff]
    %v153 = vld [vmem:[#allocation2 + $0x188] sm:$0xff]
    %v154 = vld [vmem:[#allocation2 + $0x190] sm:$0xff]
    %v155 = vld [vmem:[#allocation2 + $0x198] sm:$0xff]
    %v156 = vld [vmem:[#allocation2 + $0x1a0] sm:$0xff]
    %v157 = vld [vmem:[#allocation2 + $0x1a8] sm:$0xff]
    %v158 = vld [vmem:[#allocation2 + $0x1b0] sm:$0xff]
    %v159 = vld [vmem:[#allocation2 + $0x1b8] sm:$0xff]
    %v160 = vpack.c.bf16 %v111, %v104
    %v161 = vpack.c.bf16 %v112, %v105
    %v162 = vpack.c.bf16 %v113, %v106
    %v163 = vpack.c.bf16 %v114, %v107
    %v164 = vpack.c.bf16 %v115, %v108
    %v165 = vpack.c.bf16 %v116, %v109
    %v166 = vpack.c.bf16 %v117, %v110
    %v167 = vpack.c.bf16 %v125, %v118
    %v168 = vpack.c.bf16 %v126, %v119
    %v169 = vpack.c.bf16 %v127, %v120
    %v170 = vpack.c.bf16 %v128, %v121
    %v171 = vpack.c.bf16 %v129, %v122
    %v172 = vpack.c.bf16 %v130, %v123
    %v173 = vpack.c.bf16 %v131, %v124
    %v174 = vpack.c.bf16 %v139, %v132
    %v175 = vpack.c.bf16 %v140, %v133
    %v176 = vpack.c.bf16 %v141, %v134
    %v177 = vpack.c.bf16 %v142, %v135
    %v178 = vpack.c.bf16 %v143, %v136
    %v179 = vpack.c.bf16 %v144, %v137
    %v180 = vpack.c.bf16 %v145, %v138
    %v181 = vpack.c.bf16 %v153, %v146
    %v182 = vpack.c.bf16 %v154, %v147
    %v183 = vpack.c.bf16 %v155, %v148
    %v184 = vpack.c.bf16 %v156, %v149
    %v185 = vpack.c.bf16 %v157, %v150
    %v186 = vpack.c.bf16 %v158, %v151
    %v187 = vpack.c.bf16 %v159, %v152
    %v188 = vld [vmem:[#allocation5] sm:$0xff]
    %v189 = vld [vmem:[#allocation5 + $0x8] sm:$0xff]
    %v190 = vld [vmem:[#allocation5 + $0x10] sm:$0xff]
    %v191 = vld [vmem:[#allocation5 + $0x18] sm:$0xff]
    %v192 = vld [vmem:[#allocation5 + $0x20] sm:$0xff]
    %v193 = vld [vmem:[#allocation5 + $0x28] sm:$0xff]
    %v194 = vld [vmem:[#allocation5 + $0x30] sm:$0xff]
    %v195 = vld [vmem:[#allocation5 + $0x38] sm:$0xff]
    %v196 = vld [vmem:[#allocation5 + $0x40] sm:$0xff]
    %v197 = vld [vmem:[#allocation5 + $0x48] sm:$0xff]
    %v198 = vld [vmem:[#allocation5 + $0x50] sm:$0xff]
    %v199 = vld [vmem:[#allocation5 + $0x58] sm:$0xff]
    %v200 = vld [vmem:[#allocation5 + $0x60] sm:$0xff]
    %v201 = vld [vmem:[#allocation5 + $0x68] sm:$0xff]
    %v202 = vld [vmem:[#allocation5 + $0x70] sm:$0xff]
    %v203 = vld [vmem:[#allocation5 + $0x78] sm:$0xff]
    %v204 = vld [vmem:[#allocation5 + $0x80] sm:$0xff]
    %v205 = vld [vmem:[#allocation5 + $0x88] sm:$0xff]
    %v206 = vld [vmem:[#allocation5 + $0x90] sm:$0xff]
    %v207 = vld [vmem:[#allocation5 + $0x98] sm:$0xff]
    %v208 = vld [vmem:[#allocation5 + $0xa0] sm:$0xff]
    %v209 = vld [vmem:[#allocation5 + $0xa8] sm:$0xff]
    %v210 = vld [vmem:[#allocation5 + $0xb0] sm:$0xff]
    %v211 = vld [vmem:[#allocation5 + $0xb8] sm:$0xff]
    %v212 = vld [vmem:[#allocation5 + $0xc0] sm:$0xff]
    %v213 = vld [vmem:[#allocation5 + $0xc8] sm:$0xff]
    %v214 = vld [vmem:[#allocation5 + $0xd0] sm:$0xff]
    %v215 = vld [vmem:[#allocation5 + $0xd8] sm:$0xff]
    %v216 = vld [vmem:[#allocation5 + $0xe0] sm:$0xff]
    %v217 = vld [vmem:[#allocation5 + $0xe8] sm:$0xff]
    %v218 = vld [vmem:[#allocation5 + $0xf0] sm:$0xff]
    %v219 = vld [vmem:[#allocation5 + $0xf8] sm:$0xff]
    %v220 = vld [vmem:[#allocation5 + $0x100] sm:$0xff]
    %v221 = vld [vmem:[#allocation5 + $0x108] sm:$0xff]
    %v222 = vld [vmem:[#allocation5 + $0x110] sm:$0xff]
    %v223 = vld [vmem:[#allocation5 + $0x118] sm:$0xff]
    %v224 = vld [vmem:[#allocation5 + $0x120] sm:$0xff]
    %v225 = vld [vmem:[#allocation5 + $0x128] sm:$0xff]
    %v226 = vld [vmem:[#allocation5 + $0x130] sm:$0xff]
    %v227 = vld [vmem:[#allocation5 + $0x138] sm:$0xff]
    %v228 = vld [vmem:[#allocation5 + $0x140] sm:$0xff]
    %v229 = vld [vmem:[#allocation5 + $0x148] sm:$0xff]
    %v230 = vld [vmem:[#allocation5 + $0x150] sm:$0xff]
    %v231 = vld [vmem:[#allocation5 + $0x158] sm:$0xff]
    %v232 = vld [vmem:[#allocation5 + $0x160] sm:$0xff]
    %v233 = vld [vmem:[#allocation5 + $0x168] sm:$0xff]
    %v234 = vld [vmem:[#allocation5 + $0x170] sm:$0xff]
    %v235 = vld [vmem:[#allocation5 + $0x178] sm:$0xff]
    %v236 = vld [vmem:[#allocation5 + $0x180] sm:$0xff]
    %v237 = vld [vmem:[#allocation5 + $0x188] sm:$0xff]
    %v238 = vld [vmem:[#allocation5 + $0x190] sm:$0xff]
    %v239 = vld [vmem:[#allocation5 + $0x198] sm:$0xff]
    %v240 = vld [vmem:[#allocation5 + $0x1a0] sm:$0xff]
    %v241 = vld [vmem:[#allocation5 + $0x1a8] sm:$0xff]
    %v242 = vld [vmem:[#allocation5 + $0x1b0] sm:$0xff]
    %v243 = vld [vmem:[#allocation5 + $0x1b8] sm:$0xff]
    %v244 = vld [vmem:[#allocation5 + $0x1c0] sm:$0xff]
    %v245 = vld [vmem:[#allocation5 + $0x1c8] sm:$0xff]
    %v246 = vld [vmem:[#allocation5 + $0x1d0] sm:$0xff]
    %v247 = vld [vmem:[#allocation5 + $0x1d8] sm:$0xff]
    %v248 = vld [vmem:[#allocation5 + $0x1e0] sm:$0xff]
    %v249 = vld [vmem:[#allocation5 + $0x1e8] sm:$0xff]
    %v250 = vld [vmem:[#allocation5 + $0x1f0] sm:$0xff]
    %v251 = vld [vmem:[#allocation5 + $0x1f8] sm:$0xff]
    %v252 = vld [vmem:[#allocation5 + $0x200] sm:$0xff]
    %v253 = vld [vmem:[#allocation5 + $0x208] sm:$0xff]
    %v254 = vld [vmem:[#allocation5 + $0x210] sm:$0xff]
    %v255 = vld [vmem:[#allocation5 + $0x218] sm:$0xff]
    %v256 = vld [vmem:[#allocation5 + $0x220] sm:$0xff]
    %v257 = vld [vmem:[#allocation5 + $0x228] sm:$0xff]
    %v258 = vld [vmem:[#allocation5 + $0x230] sm:$0xff]
    %v259 = vld [vmem:[#allocation5 + $0x238] sm:$0xff]
    %v260 = vld [vmem:[#allocation5 + $0x240] sm:$0xff]
    %v261 = vld [vmem:[#allocation5 + $0x248] sm:$0xff]
    %v262 = vld [vmem:[#allocation5 + $0x250] sm:$0xff]
    %v263 = vld [vmem:[#allocation5 + $0x258] sm:$0xff]
    %v264 = vld [vmem:[#allocation5 + $0x260] sm:$0xff]
    %v265 = vld [vmem:[#allocation5 + $0x268] sm:$0xff]
    %v266 = vld [vmem:[#allocation5 + $0x270] sm:$0xff]
    %v267 = vld [vmem:[#allocation5 + $0x278] sm:$0xff]
    %v268 = vld [vmem:[#allocation5 + $0x280] sm:$0xff]
    %v269 = vld [vmem:[#allocation5 + $0x288] sm:$0xff]
    %v270 = vld [vmem:[#allocation5 + $0x290] sm:$0xff]
    %v271 = vld [vmem:[#allocation5 + $0x298] sm:$0xff]
    %v272 = vld [vmem:[#allocation5 + $0x2a0] sm:$0xff]
    %v273 = vld [vmem:[#allocation5 + $0x2a8] sm:$0xff]
    %v274 = vld [vmem:[#allocation5 + $0x2b0] sm:$0xff]
    %v275 = vld [vmem:[#allocation5 + $0x2b8] sm:$0xff]
    %v276 = vld [vmem:[#allocation5 + $0x2c0] sm:$0xff]
    %v277 = vld [vmem:[#allocation5 + $0x2c8] sm:$0xff]
    %v278 = vld [vmem:[#allocation5 + $0x2d0] sm:$0xff]
    %v279 = vld [vmem:[#allocation5 + $0x2d8] sm:$0xff]
    %v280 = vld [vmem:[#allocation5 + $0x2e0] sm:$0xff]
    %v281 = vld [vmem:[#allocation5 + $0x2e8] sm:$0xff]
    %v282 = vld [vmem:[#allocation5 + $0x2f0] sm:$0xff]
    %v283 = vld [vmem:[#allocation5 + $0x2f8] sm:$0xff]
    %v284 = vld [vmem:[#allocation5 + $0x300] sm:$0xff]
    %v285 = vld [vmem:[#allocation5 + $0x308] sm:$0xff]
    %v286 = vld [vmem:[#allocation5 + $0x310] sm:$0xff]
    %v287 = vld [vmem:[#allocation5 + $0x318] sm:$0xff]
    %v288 = vld [vmem:[#allocation5 + $0x320] sm:$0xff]
    %v289 = vld [vmem:[#allocation5 + $0x328] sm:$0xff]
    %v290 = vld [vmem:[#allocation5 + $0x330] sm:$0xff]
    %v291 = vld [vmem:[#allocation5 + $0x338] sm:$0xff]
    %v292 = vld [vmem:[#allocation5 + $0x340] sm:$0xff]
    %v293 = vld [vmem:[#allocation5 + $0x348] sm:$0xff]
    %v294 = vld [vmem:[#allocation5 + $0x350] sm:$0xff]
    %v295 = vld [vmem:[#allocation5 + $0x358] sm:$0xff]
    %v296 = vld [vmem:[#allocation5 + $0x360] sm:$0xff]
    %v297 = vld [vmem:[#allocation5 + $0x368] sm:$0xff]
    %v298 = vld [vmem:[#allocation5 + $0x370] sm:$0xff]
    %v299 = vld [vmem:[#allocation5 + $0x378] sm:$0xff]
    %v300 = vld [vmem:[#allocation5 + $0x380] sm:$0xff]
    %v301 = vld [vmem:[#allocation5 + $0x388] sm:$0xff]
    %v302 = vld [vmem:[#allocation5 + $0x390] sm:$0xff]
    %v303 = vld [vmem:[#allocation5 + $0x398] sm:$0xff]
    %v304 = vld [vmem:[#allocation5 + $0x3a0] sm:$0xff]
    %v305 = vld [vmem:[#allocation5 + $0x3a8] sm:$0xff]
    %v306 = vld [vmem:[#allocation5 + $0x3b0] sm:$0xff]
    %v307 = vld [vmem:[#allocation5 + $0x3b8] sm:$0xff]
    %v308 = vld [vmem:[#allocation5 + $0x3c0] sm:$0xff]
    %v309 = vld [vmem:[#allocation5 + $0x3c8] sm:$0xff]
    %v310 = vld [vmem:[#allocation5 + $0x3d0] sm:$0xff]
    %v311 = vld [vmem:[#allocation5 + $0x3d8] sm:$0xff]
    %v312 = vld [vmem:[#allocation5 + $0x3e0] sm:$0xff]
    %v313 = vld [vmem:[#allocation5 + $0x3e8] sm:$0xff]
    %v314 = vld [vmem:[#allocation5 + $0x3f0] sm:$0xff]
    %v315 = vld [vmem:[#allocation5 + $0x3f8] sm:$0xff]
    %v316 = vld [vmem:[#allocation5 + $0x400] sm:$0xff]
    %v317 = vld [vmem:[#allocation5 + $0x408] sm:$0xff]
    %v318 = vld [vmem:[#allocation5 + $0x410] sm:$0xff]
    %v319 = vld [vmem:[#allocation5 + $0x418] sm:$0xff]
    %v320 = vld [vmem:[#allocation5 + $0x420] sm:$0xff]
    %v321 = vld [vmem:[#allocation5 + $0x428] sm:$0xff]
    %v322 = vld [vmem:[#allocation5 + $0x430] sm:$0xff]
    %v323 = vld [vmem:[#allocation5 + $0x438] sm:$0xff]
    %v324 = vld [vmem:[#allocation5 + $0x440] sm:$0xff]
    %v325 = vld [vmem:[#allocation5 + $0x448] sm:$0xff]
    %v326 = vld [vmem:[#allocation5 + $0x450] sm:$0xff]
    %v327 = vld [vmem:[#allocation5 + $0x458] sm:$0xff]
    %v328 = vld [vmem:[#allocation5 + $0x460] sm:$0xff]
    %v329 = vld [vmem:[#allocation5 + $0x468] sm:$0xff]
    %v330 = vld [vmem:[#allocation5 + $0x470] sm:$0xff]
    %v331 = vld [vmem:[#allocation5 + $0x478] sm:$0xff]
    %v332 = vld [vmem:[#allocation5 + $0x480] sm:$0xff]
    %v333 = vld [vmem:[#allocation5 + $0x488] sm:$0xff]
    %v334 = vld [vmem:[#allocation5 + $0x490] sm:$0xff]
    %v335 = vld [vmem:[#allocation5 + $0x498] sm:$0xff]
    %v336 = vld [vmem:[#allocation5 + $0x4a0] sm:$0xff]
    %v337 = vld [vmem:[#allocation5 + $0x4a8] sm:$0xff]
    %v338 = vld [vmem:[#allocation5 + $0x4b0] sm:$0xff]
    %v339 = vld [vmem:[#allocation5 + $0x4b8] sm:$0xff]
    %v340 = vld [vmem:[#allocation5 + $0x4c0] sm:$0xff]
    %v341 = vld [vmem:[#allocation5 + $0x4c8] sm:$0xff]
    %v342 = vld [vmem:[#allocation5 + $0x4d0] sm:$0xff]
    %v343 = vld [vmem:[#allocation5 + $0x4d8] sm:$0xff]
    %v344 = vld [vmem:[#allocation5 + $0x4e0] sm:$0xff]
    %v345 = vld [vmem:[#allocation5 + $0x4e8] sm:$0xff]
    %v346 = vld [vmem:[#allocation5 + $0x4f0] sm:$0xff]
    %v347 = vld [vmem:[#allocation5 + $0x4f8] sm:$0xff]
    %v348 = vld [vmem:[#allocation5 + $0x500] sm:$0xff]
    %v349 = vld [vmem:[#allocation5 + $0x508] sm:$0xff]
    %v350 = vld [vmem:[#allocation5 + $0x510] sm:$0xff]
    %v351 = vld [vmem:[#allocation5 + $0x518] sm:$0xff]
    %v352 = vld [vmem:[#allocation5 + $0x520] sm:$0xff]
    %v353 = vld [vmem:[#allocation5 + $0x528] sm:$0xff]
    %v354 = vld [vmem:[#allocation5 + $0x530] sm:$0xff]
    %v355 = vld [vmem:[#allocation5 + $0x538] sm:$0xff]
    %v356 = vld [vmem:[#allocation5 + $0x540] sm:$0xff]
    %v357 = vld [vmem:[#allocation5 + $0x548] sm:$0xff]
    %v358 = vld [vmem:[#allocation5 + $0x550] sm:$0xff]
    %v359 = vld [vmem:[#allocation5 + $0x558] sm:$0xff]
    %v360 = vld [vmem:[#allocation5 + $0x560] sm:$0xff]
    %v361 = vld [vmem:[#allocation5 + $0x568] sm:$0xff]
    %v362 = vld [vmem:[#allocation5 + $0x570] sm:$0xff]
    %v363 = vld [vmem:[#allocation5 + $0x578] sm:$0xff]
    %v364 = vld [vmem:[#allocation5 + $0x580] sm:$0xff]
    %v365 = vld [vmem:[#allocation5 + $0x588] sm:$0xff]
    %v366 = vld [vmem:[#allocation5 + $0x590] sm:$0xff]
    %v367 = vld [vmem:[#allocation5 + $0x598] sm:$0xff]
    %v368 = vld [vmem:[#allocation5 + $0x5a0] sm:$0xff]
    %v369 = vld [vmem:[#allocation5 + $0x5a8] sm:$0xff]
    %v370 = vld [vmem:[#allocation5 + $0x5b0] sm:$0xff]
    %v371 = vld [vmem:[#allocation5 + $0x5b8] sm:$0xff]
    %v372 = vld [vmem:[#allocation5 + $0x5c0] sm:$0xff]
    %v373 = vld [vmem:[#allocation5 + $0x5c8] sm:$0xff]
    %v374 = vld [vmem:[#allocation5 + $0x5d0] sm:$0xff]
    %v375 = vld [vmem:[#allocation5 + $0x5d8] sm:$0xff]
    %v376 = vld [vmem:[#allocation5 + $0x5e0] sm:$0xff]
    %v377 = vld [vmem:[#allocation5 + $0x5e8] sm:$0xff]
    %v378 = vld [vmem:[#allocation5 + $0x5f0] sm:$0xff]
    %v379 = vld [vmem:[#allocation5 + $0x5f8] sm:$0xff]
    %v380 = vld [vmem:[#allocation5 + $0x600] sm:$0xff]
    %v381 = vld [vmem:[#allocation5 + $0x608] sm:$0xff]
    %v382 = vld [vmem:[#allocation5 + $0x610] sm:$0xff]
    %v383 = vld [vmem:[#allocation5 + $0x618] sm:$0xff]
    %v384 = vld [vmem:[#allocation7] sm:$0xf]
    %v386 = vperm.slane %v384, 0
    %v387 = vperm.slane %v384, 1
    %v388 = vperm.slane %v384, 2
    %v389 = vperm.slane %v384, 3
    %v590 = vunpack.c.l.b16 %v188
    %v591 = vunpack.c.h.b16 %v188
    %v592 = vunpack.c.l.b16 %v189
    %v593 = vunpack.c.h.b16 %v189
    %v594 = vunpack.c.l.b16 %v190
    %v595 = vunpack.c.h.b16 %v190
    %v596 = vunpack.c.l.b16 %v191
    %v597 = vunpack.c.h.b16 %v191
    %v598 = vunpack.c.l.b16 %v192
    %v599 = vunpack.c.h.b16 %v192
    %v600 = vunpack.c.l.b16 %v193
    %v601 = vunpack.c.h.b16 %v193
    %v602 = vunpack.c.l.b16 %v194
    %v603 = vunpack.c.h.b16 %v194
    %v604 = vunpack.c.l.b16 %v195
    %v605 = vunpack.c.h.b16 %v195
    %v606 = vunpack.c.l.b16 %v196
    %v607 = vunpack.c.h.b16 %v196
    %v608 = vunpack.c.l.b16 %v197
    %v609 = vunpack.c.h.b16 %v197
    %v610 = vunpack.c.l.b16 %v198
    %v611 = vunpack.c.h.b16 %v198
    %v612 = vunpack.c.l.b16 %v199
    %v613 = vunpack.c.h.b16 %v199
    %v614 = vunpack.c.l.b16 %v200
    %v615 = vunpack.c.h.b16 %v200
    %v616 = vunpack.c.l.b16 %v201
    %v617 = vunpack.c.h.b16 %v201
    %v618 = vunpack.c.l.b16 %v202
    %v619 = vunpack.c.h.b16 %v202
    %v620 = vunpack.c.l.b16 %v203
    %v621 = vunpack.c.h.b16 %v203
    %v622 = vunpack.c.l.b16 %v204
    %v623 = vunpack.c.h.b16 %v204
    %v624 = vunpack.c.l.b16 %v205
    %v625 = vunpack.c.h.b16 %v205
    %v626 = vunpack.c.l.b16 %v206
    %v627 = vunpack.c.h.b16 %v206
    %v628 = vunpack.c.l.b16 %v207
    %v629 = vunpack.c.h.b16 %v207
    %v630 = vunpack.c.l.b16 %v208
    %v631 = vunpack.c.h.b16 %v208
    %v632 = vunpack.c.l.b16 %v209
    %v633 = vunpack.c.h.b16 %v209
    %v634 = vunpack.c.l.b16 %v210
    %v635 = vunpack.c.h.b16 %v210
    %v636 = vunpack.c.l.b16 %v211
    %v637 = vunpack.c.h.b16 %v211
    %v638 = vunpack.c.l.b16 %v212
    %v639 = vunpack.c.h.b16 %v212
    %v640 = vunpack.c.l.b16 %v213
    %v641 = vunpack.c.h.b16 %v213
    %v642 = vunpack.c.l.b16 %v214
    %v643 = vunpack.c.h.b16 %v214
    %v644 = vunpack.c.l.b16 %v215
    %v645 = vunpack.c.h.b16 %v215
    %v646 = vunpack.c.l.b16 %v216
    %v647 = vunpack.c.h.b16 %v216
    %v648 = vunpack.c.l.b16 %v217
    %v649 = vunpack.c.h.b16 %v217
    %v650 = vunpack.c.l.b16 %v218
    %v651 = vunpack.c.h.b16 %v218
    %v652 = vunpack.c.l.b16 %v219
    %v653 = vunpack.c.h.b16 %v219
    %v654 = vunpack.c.l.b16 %v220
    %v655 = vunpack.c.h.b16 %v220
    %v656 = vunpack.c.l.b16 %v221
    %v657 = vunpack.c.h.b16 %v221
    %v658 = vunpack.c.l.b16 %v222
    %v659 = vunpack.c.h.b16 %v222
    %v660 = vunpack.c.l.b16 %v223
    %v661 = vunpack.c.h.b16 %v223
    %v662 = vunpack.c.l.b16 %v224
    %v663 = vunpack.c.h.b16 %v224
    %v664 = vunpack.c.l.b16 %v225
    %v665 = vunpack.c.h.b16 %v225
    %v666 = vunpack.c.l.b16 %v226
    %v667 = vunpack.c.h.b16 %v226
    %v668 = vunpack.c.l.b16 %v227
    %v669 = vunpack.c.h.b16 %v227
    %v670 = vunpack.c.l.b16 %v228
    %v671 = vunpack.c.h.b16 %v228
    %v672 = vunpack.c.l.b16 %v229
    %v673 = vunpack.c.h.b16 %v229
    %v674 = vunpack.c.l.b16 %v230
    %v675 = vunpack.c.h.b16 %v230
    %v676 = vunpack.c.l.b16 %v231
    %v677 = vunpack.c.h.b16 %v231
    %v678 = vunpack.c.l.b16 %v232
    %v679 = vunpack.c.h.b16 %v232
    %v680 = vunpack.c.l.b16 %v233
    %v681 = vunpack.c.h.b16 %v233
    %v682 = vunpack.c.l.b16 %v234
    %v683 = vunpack.c.h.b16 %v234
    %v684 = vunpack.c.l.b16 %v235
    %v685 = vunpack.c.h.b16 %v235
    %v686 = vunpack.c.l.b16 %v236
    %v687 = vunpack.c.h.b16 %v236
    %v688 = vunpack.c.l.b16 %v237
    %v689 = vunpack.c.h.b16 %v237
    %v690 = vunpack.c.l.b16 %v238
    %v691 = vunpack.c.h.b16 %v238
    %v692 = vunpack.c.l.b16 %v239
    %v693 = vunpack.c.h.b16 %v239
    %v694 = vunpack.c.l.b16 %v240
    %v695 = vunpack.c.h.b16 %v240
    %v696 = vunpack.c.l.b16 %v241
    %v697 = vunpack.c.h.b16 %v241
    %v698 = vunpack.c.l.b16 %v242
    %v699 = vunpack.c.h.b16 %v242
    %v700 = vunpack.c.l.b16 %v243
    %v701 = vunpack.c.h.b16 %v243
    %v702 = vunpack.c.l.b16 %v244
    %v703 = vunpack.c.h.b16 %v244
    %v704 = vunpack.c.l.b16 %v245
    %v705 = vunpack.c.h.b16 %v245
    %v706 = vunpack.c.l.b16 %v246
    %v707 = vunpack.c.h.b16 %v246
    %v708 = vunpack.c.l.b16 %v247
    %v709 = vunpack.c.h.b16 %v247
    %v710 = vunpack.c.l.b16 %v248
    %v711 = vunpack.c.h.b16 %v248
    %v712 = vunpack.c.l.b16 %v249
    %v713 = vunpack.c.h.b16 %v249
    %v714 = vunpack.c.l.b16 %v250
    %v715 = vunpack.c.h.b16 %v250
    %v716 = vunpack.c.l.b16 %v251
    %v717 = vunpack.c.h.b16 %v251
    %v718 = vunpack.c.l.b16 %v252
    %v719 = vunpack.c.h.b16 %v252
    %v720 = vunpack.c.l.b16 %v253
    %v721 = vunpack.c.h.b16 %v253
    %v722 = vunpack.c.l.b16 %v254
    %v723 = vunpack.c.h.b16 %v254
    %v724 = vunpack.c.l.b16 %v255
    %v725 = vunpack.c.h.b16 %v255
    %v726 = vunpack.c.l.b16 %v256
    %v727 = vunpack.c.h.b16 %v256
    %v728 = vunpack.c.l.b16 %v257
    %v729 = vunpack.c.h.b16 %v257
    %v730 = vunpack.c.l.b16 %v258
    %v731 = vunpack.c.h.b16 %v258
    %v732 = vunpack.c.l.b16 %v259
    %v733 = vunpack.c.h.b16 %v259
    %v734 = vunpack.c.l.b16 %v260
    %v735 = vunpack.c.h.b16 %v260
    %v736 = vunpack.c.l.b16 %v261
    %v737 = vunpack.c.h.b16 %v261
    %v738 = vunpack.c.l.b16 %v262
    %v739 = vunpack.c.h.b16 %v262
    %v740 = vunpack.c.l.b16 %v263
    %v741 = vunpack.c.h.b16 %v263
    %v742 = vunpack.c.l.b16 %v264
    %v743 = vunpack.c.h.b16 %v264
    %v744 = vunpack.c.l.b16 %v265
    %v745 = vunpack.c.h.b16 %v265
    %v746 = vunpack.c.l.b16 %v266
    %v747 = vunpack.c.h.b16 %v266
    %v748 = vunpack.c.l.b16 %v267
    %v749 = vunpack.c.h.b16 %v267
    %v750 = vunpack.c.l.b16 %v268
    %v751 = vunpack.c.h.b16 %v268
    %v752 = vunpack.c.l.b16 %v269
    %v753 = vunpack.c.h.b16 %v269
    %v754 = vunpack.c.l.b16 %v270
    %v755 = vunpack.c.h.b16 %v270
    %v756 = vunpack.c.l.b16 %v271
    %v757 = vunpack.c.h.b16 %v271
    %v758 = vunpack.c.l.b16 %v272
    %v759 = vunpack.c.h.b16 %v272
    %v760 = vunpack.c.l.b16 %v273
    %v761 = vunpack.c.h.b16 %v273
    %v762 = vunpack.c.l.b16 %v274
    %v763 = vunpack.c.h.b16 %v274
    %v764 = vunpack.c.l.b16 %v275
    %v765 = vunpack.c.h.b16 %v275
    %v766 = vunpack.c.l.b16 %v276
    %v767 = vunpack.c.h.b16 %v276
    %v768 = vunpack.c.l.b16 %v277
    %v769 = vunpack.c.h.b16 %v277
    %v770 = vunpack.c.l.b16 %v278
    %v771 = vunpack.c.h.b16 %v278
    %v772 = vunpack.c.l.b16 %v279
    %v773 = vunpack.c.h.b16 %v279
    %v774 = vunpack.c.l.b16 %v280
    %v775 = vunpack.c.h.b16 %v280
    %v776 = vunpack.c.l.b16 %v281
    %v777 = vunpack.c.h.b16 %v281
    %v778 = vunpack.c.l.b16 %v282
    %v779 = vunpack.c.h.b16 %v282
    %v780 = vunpack.c.l.b16 %v283
    %v781 = vunpack.c.h.b16 %v283
    %v782 = vunpack.c.l.b16 %v284
    %v783 = vunpack.c.h.b16 %v284
    %v784 = vunpack.c.l.b16 %v285
    %v785 = vunpack.c.h.b16 %v285
    %v786 = vunpack.c.l.b16 %v286
    %v787 = vunpack.c.h.b16 %v286
    %v788 = vunpack.c.l.b16 %v287
    %v789 = vunpack.c.h.b16 %v287
    %v790 = vunpack.c.l.b16 %v288
    %v791 = vunpack.c.h.b16 %v288
    %v792 = vunpack.c.l.b16 %v289
    %v793 = vunpack.c.h.b16 %v289
    %v794 = vunpack.c.l.b16 %v290
    %v795 = vunpack.c.h.b16 %v290
    %v796 = vunpack.c.l.b16 %v291
    %v797 = vunpack.c.h.b16 %v291
    %v798 = vunpack.c.l.b16 %v292
    %v799 = vunpack.c.h.b16 %v292
    %v800 = vunpack.c.l.b16 %v293
    %v801 = vunpack.c.h.b16 %v293
    %v802 = vunpack.c.l.b16 %v294
    %v803 = vunpack.c.h.b16 %v294
    %v804 = vunpack.c.l.b16 %v295
    %v805 = vunpack.c.h.b16 %v295
    %v806 = vunpack.c.l.b16 %v296
    %v807 = vunpack.c.h.b16 %v296
    %v808 = vunpack.c.l.b16 %v297
    %v809 = vunpack.c.h.b16 %v297
    %v810 = vunpack.c.l.b16 %v298
    %v811 = vunpack.c.h.b16 %v298
    %v812 = vunpack.c.l.b16 %v299
    %v813 = vunpack.c.h.b16 %v299
    %v814 = vunpack.c.l.b16 %v300
    %v815 = vunpack.c.h.b16 %v300
    %v816 = vunpack.c.l.b16 %v301
    %v817 = vunpack.c.h.b16 %v301
    %v818 = vunpack.c.l.b16 %v302
    %v819 = vunpack.c.h.b16 %v302
    %v820 = vunpack.c.l.b16 %v303
    %v821 = vunpack.c.h.b16 %v303
    %v822 = vunpack.c.l.b16 %v304
    %v823 = vunpack.c.h.b16 %v304
    %v824 = vunpack.c.l.b16 %v305
    %v825 = vunpack.c.h.b16 %v305
    %v826 = vunpack.c.l.b16 %v306
    %v827 = vunpack.c.h.b16 %v306
    %v828 = vunpack.c.l.b16 %v307
    %v829 = vunpack.c.h.b16 %v307
    %v830 = vunpack.c.l.b16 %v308
    %v831 = vunpack.c.h.b16 %v308
    %v832 = vunpack.c.l.b16 %v309
    %v833 = vunpack.c.h.b16 %v309
    %v834 = vunpack.c.l.b16 %v310
    %v835 = vunpack.c.h.b16 %v310
    %v836 = vunpack.c.l.b16 %v311
    %v837 = vunpack.c.h.b16 %v311
    %v838 = vunpack.c.l.b16 %v312
    %v839 = vunpack.c.h.b16 %v312
    %v840 = vunpack.c.l.b16 %v313
    %v841 = vunpack.c.h.b16 %v313
    %v842 = vunpack.c.l.b16 %v314
    %v843 = vunpack.c.h.b16 %v314
    %v844 = vunpack.c.l.b16 %v315
    %v845 = vunpack.c.h.b16 %v315
    %v846 = vunpack.c.l.b16 %v316
    %v847 = vunpack.c.h.b16 %v316
    %v848 = vunpack.c.l.b16 %v317
    %v849 = vunpack.c.h.b16 %v317
    %v850 = vunpack.c.l.b16 %v318
    %v851 = vunpack.c.h.b16 %v318
    %v852 = vunpack.c.l.b16 %v319
    %v853 = vunpack.c.h.b16 %v319
    %v854 = vunpack.c.l.b16 %v320
    %v855 = vunpack.c.h.b16 %v320
    %v856 = vunpack.c.l.b16 %v321
    %v857 = vunpack.c.h.b16 %v321
    %v858 = vunpack.c.l.b16 %v322
    %v859 = vunpack.c.h.b16 %v322
    %v860 = vunpack.c.l.b16 %v323
    %v861 = vunpack.c.h.b16 %v323
    %v862 = vunpack.c.l.b16 %v324
    %v863 = vunpack.c.h.b16 %v324
    %v864 = vunpack.c.l.b16 %v325
    %v865 = vunpack.c.h.b16 %v325
    %v866 = vunpack.c.l.b16 %v326
    %v867 = vunpack.c.h.b16 %v326
    %v868 = vunpack.c.l.b16 %v327
    %v869 = vunpack.c.h.b16 %v327
    %v870 = vunpack.c.l.b16 %v328
    %v871 = vunpack.c.h.b16 %v328
    %v872 = vunpack.c.l.b16 %v329
    %v873 = vunpack.c.h.b16 %v329
    %v874 = vunpack.c.l.b16 %v330
    %v875 = vunpack.c.h.b16 %v330
    %v876 = vunpack.c.l.b16 %v331
    %v877 = vunpack.c.h.b16 %v331
    %v878 = vunpack.c.l.b16 %v332
    %v879 = vunpack.c.h.b16 %v332
    %v880 = vunpack.c.l.b16 %v333
    %v881 = vunpack.c.h.b16 %v333
    %v882 = vunpack.c.l.b16 %v334
    %v883 = vunpack.c.h.b16 %v334
    %v884 = vunpack.c.l.b16 %v335
    %v885 = vunpack.c.h.b16 %v335
    %v886 = vunpack.c.l.b16 %v336
    %v887 = vunpack.c.h.b16 %v336
    %v888 = vunpack.c.l.b16 %v337
    %v889 = vunpack.c.h.b16 %v337
    %v890 = vunpack.c.l.b16 %v338
    %v891 = vunpack.c.h.b16 %v338
    %v892 = vunpack.c.l.b16 %v339
    %v893 = vunpack.c.h.b16 %v339
    %v894 = vunpack.c.l.b16 %v340
    %v895 = vunpack.c.h.b16 %v340
    %v896 = vunpack.c.l.b16 %v341
    %v897 = vunpack.c.h.b16 %v341
    %v898 = vunpack.c.l.b16 %v342
    %v899 = vunpack.c.h.b16 %v342
    %v900 = vunpack.c.l.b16 %v343
    %v901 = vunpack.c.h.b16 %v343
    %v902 = vunpack.c.l.b16 %v344
    %v903 = vunpack.c.h.b16 %v344
    %v904 = vunpack.c.l.b16 %v345
    %v905 = vunpack.c.h.b16 %v345
    %v906 = vunpack.c.l.b16 %v346
    %v907 = vunpack.c.h.b16 %v346
    %v908 = vunpack.c.l.b16 %v347
    %v909 = vunpack.c.h.b16 %v347
    %v910 = vunpack.c.l.b16 %v348
    %v911 = vunpack.c.h.b16 %v348
    %v912 = vunpack.c.l.b16 %v349
    %v913 = vunpack.c.h.b16 %v349
    %v914 = vunpack.c.l.b16 %v350
    %v915 = vunpack.c.h.b16 %v350
    %v916 = vunpack.c.l.b16 %v351
    %v917 = vunpack.c.h.b16 %v351
    %v918 = vunpack.c.l.b16 %v352
    %v919 = vunpack.c.h.b16 %v352
    %v920 = vunpack.c.l.b16 %v353
    %v921 = vunpack.c.h.b16 %v353
    %v922 = vunpack.c.l.b16 %v354
    %v923 = vunpack.c.h.b16 %v354
    %v924 = vunpack.c.l.b16 %v355
    %v925 = vunpack.c.h.b16 %v355
    %v926 = vunpack.c.l.b16 %v356
    %v927 = vunpack.c.h.b16 %v356
    %v928 = vunpack.c.l.b16 %v357
    %v929 = vunpack.c.h.b16 %v357
    %v930 = vunpack.c.l.b16 %v358
    %v931 = vunpack.c.h.b16 %v358
    %v932 = vunpack.c.l.b16 %v359
    %v933 = vunpack.c.h.b16 %v359
    %v934 = vunpack.c.l.b16 %v360
    %v935 = vunpack.c.h.b16 %v360
    %v936 = vunpack.c.l.b16 %v361
    %v937 = vunpack.c.h.b16 %v361
    %v938 = vunpack.c.l.b16 %v362
    %v939 = vunpack.c.h.b16 %v362
    %v940 = vunpack.c.l.b16 %v363
    %v941 = vunpack.c.h.b16 %v363
    %v942 = vunpack.c.l.b16 %v364
    %v943 = vunpack.c.h.b16 %v364
    %v944 = vunpack.c.l.b16 %v365
    %v945 = vunpack.c.h.b16 %v365
    %v946 = vunpack.c.l.b16 %v366
    %v947 = vunpack.c.h.b16 %v366
    %v948 = vunpack.c.l.b16 %v367
    %v949 = vunpack.c.h.b16 %v367
    %v950 = vunpack.c.l.b16 %v368
    %v951 = vunpack.c.h.b16 %v368
    %v952 = vunpack.c.l.b16 %v369
    %v953 = vunpack.c.h.b16 %v369
    %v954 = vunpack.c.l.b16 %v370
    %v955 = vunpack.c.h.b16 %v370
    %v956 = vunpack.c.l.b16 %v371
    %v957 = vunpack.c.h.b16 %v371
    %v958 = vunpack.c.l.b16 %v372
    %v959 = vunpack.c.h.b16 %v372
    %v960 = vunpack.c.l.b16 %v373
    %v961 = vunpack.c.h.b16 %v373
    %v962 = vunpack.c.l.b16 %v374
    %v963 = vunpack.c.h.b16 %v374
    %v964 = vunpack.c.l.b16 %v375
    %v965 = vunpack.c.h.b16 %v375
    %v966 = vunpack.c.l.b16 %v376
    %v967 = vunpack.c.h.b16 %v376
    %v968 = vunpack.c.l.b16 %v377
    %v969 = vunpack.c.h.b16 %v377
    %v970 = vunpack.c.l.b16 %v378
    %v971 = vunpack.c.h.b16 %v378
    %v972 = vunpack.c.l.b16 %v379
    %v973 = vunpack.c.h.b16 %v379
    %v974 = vunpack.c.l.b16 %v380
    %v975 = vunpack.c.h.b16 %v380
    %v976 = vunpack.c.l.b16 %v381
    %v977 = vunpack.c.h.b16 %v381
    %v978 = vunpack.c.l.b16 %v382
    %v979 = vunpack.c.h.b16 %v382
    %v980 = vunpack.c.l.b16 %v383
    %v981 = vunpack.c.h.b16 %v383
    %v982 = vpack.c.b16 %v594, %v590
    %v983 = vpack.c.b16 %v595, %v591
    %v984 = vpack.c.b16 %v596, %v592
    %v985 = vpack.c.b16 %v597, %v593
    %v986 = vpack.c.b16 %v602, %v598
    %v987 = vpack.c.b16 %v603, %v599
    %v988 = vpack.c.b16 %v604, %v600
    %v989 = vpack.c.b16 %v605, %v601
    %v990 = vpack.c.b16 %v610, %v606
    %v991 = vpack.c.b16 %v611, %v607
    %v992 = vpack.c.b16 %v612, %v608
    %v993 = vpack.c.b16 %v613, %v609
    %v994 = vpack.c.b16 %v618, %v614
    %v995 = vpack.c.b16 %v619, %v615
    %v996 = vpack.c.b16 %v620, %v616
    %v997 = vpack.c.b16 %v621, %v617
    %v998 = vpack.c.b16 %v626, %v622
    %v999 = vpack.c.b16 %v627, %v623
    %v1000 = vpack.c.b16 %v628, %v624
    %v1001 = vpack.c.b16 %v629, %v625
    %v1002 = vpack.c.b16 %v634, %v630
    %v1003 = vpack.c.b16 %v635, %v631
    %v1004 = vpack.c.b16 %v636, %v632
    %v1005 = vpack.c.b16 %v637, %v633
    %v1006 = vpack.c.b16 %v642, %v638
    %v1007 = vpack.c.b16 %v643, %v639
    %v1008 = vpack.c.b16 %v644, %v640
    %v1009 = vpack.c.b16 %v645, %v641
    %v1010 = vpack.c.b16 %v650, %v646
    %v1011 = vpack.c.b16 %v651, %v647
    %v1012 = vpack.c.b16 %v652, %v648
    %v1013 = vpack.c.b16 %v653, %v649
    %v1014 = vpack.c.b16 %v658, %v654
    %v1015 = vpack.c.b16 %v659, %v655
    %v1016 = vpack.c.b16 %v660, %v656
    %v1017 = vpack.c.b16 %v661, %v657
    %v1018 = vpack.c.b16 %v666, %v662
    %v1019 = vpack.c.b16 %v667, %v663
    %v1020 = vpack.c.b16 %v668, %v664
    %v1021 = vpack.c.b16 %v669, %v665
    %v1022 = vpack.c.b16 %v674, %v670
    %v1023 = vpack.c.b16 %v675, %v671
    %v1024 = vpack.c.b16 %v676, %v672
    %v1025 = vpack.c.b16 %v677, %v673
    %v1026 = vpack.c.b16 %v682, %v678
    %v1027 = vpack.c.b16 %v683, %v679
    %v1028 = vpack.c.b16 %v684, %v680
    %v1029 = vpack.c.b16 %v685, %v681
    %v1030 = vpack.c.b16 %v690, %v686
    %v1031 = vpack.c.b16 %v691, %v687
    %v1032 = vpack.c.b16 %v692, %v688
    %v1033 = vpack.c.b16 %v693, %v689
    %v1034 = vpack.c.b16 %v698, %v694
    %v1035 = vpack.c.b16 %v699, %v695
    %v1036 = vpack.c.b16 %v700, %v696
    %v1037 = vpack.c.b16 %v701, %v697
    %v1038 = vpack.c.b16 %v706, %v702
    %v1039 = vpack.c.b16 %v707, %v703
    %v1040 = vpack.c.b16 %v708, %v704
    %v1041 = vpack.c.b16 %v709, %v705
    %v1042 = vpack.c.b16 %v714, %v710
    %v1043 = vpack.c.b16 %v715, %v711
    %v1044 = vpack.c.b16 %v716, %v712
    %v1045 = vpack.c.b16 %v717, %v713
    %v1046 = vpack.c.b16 %v722, %v718
    %v1047 = vpack.c.b16 %v723, %v719
    %v1048 = vpack.c.b16 %v724, %v720
    %v1049 = vpack.c.b16 %v725, %v721
    %v1050 = vpack.c.b16 %v730, %v726
    %v1051 = vpack.c.b16 %v731, %v727
    %v1052 = vpack.c.b16 %v732, %v728
    %v1053 = vpack.c.b16 %v733, %v729
    %v1054 = vpack.c.b16 %v738, %v734
    %v1055 = vpack.c.b16 %v739, %v735
    %v1056 = vpack.c.b16 %v740, %v736
    %v1057 = vpack.c.b16 %v741, %v737
    %v1058 = vpack.c.b16 %v746, %v742
    %v1059 = vpack.c.b16 %v747, %v743
    %v1060 = vpack.c.b16 %v748, %v744
    %v1061 = vpack.c.b16 %v749, %v745
    %v1062 = vpack.c.b16 %v754, %v750
    %v1063 = vpack.c.b16 %v755, %v751
    %v1064 = vpack.c.b16 %v756, %v752
    %v1065 = vpack.c.b16 %v757, %v753
    %v1066 = vpack.c.b16 %v762, %v758
    %v1067 = vpack.c.b16 %v763, %v759
    %v1068 = vpack.c.b16 %v764, %v760
    %v1069 = vpack.c.b16 %v765, %v761
    %v1070 = vpack.c.b16 %v770, %v766
    %v1071 = vpack.c.b16 %v771, %v767
    %v1072 = vpack.c.b16 %v772, %v768
    %v1073 = vpack.c.b16 %v773, %v769
    %v1074 = vpack.c.b16 %v778, %v774
    %v1075 = vpack.c.b16 %v779, %v775
    %v1076 = vpack.c.b16 %v780, %v776
    %v1077 = vpack.c.b16 %v781, %v777
    %v1078 = vpack.c.b16 %v786, %v782
    %v1079 = vpack.c.b16 %v787, %v783
    %v1080 = vpack.c.b16 %v788, %v784
    %v1081 = vpack.c.b16 %v789, %v785
    %v1082 = vpack.c.b16 %v794, %v790
    %v1083 = vpack.c.b16 %v795, %v791
    %v1084 = vpack.c.b16 %v796, %v792
    %v1085 = vpack.c.b16 %v797, %v793
    %v1086 = vpack.c.b16 %v802, %v798
    %v1087 = vpack.c.b16 %v803, %v799
    %v1088 = vpack.c.b16 %v804, %v800
    %v1089 = vpack.c.b16 %v805, %v801
    %v1090 = vpack.c.b16 %v810, %v806
    %v1091 = vpack.c.b16 %v811, %v807
    %v1092 = vpack.c.b16 %v812, %v808
    %v1093 = vpack.c.b16 %v813, %v809
    %v1094 = vpack.c.b16 %v818, %v814
    %v1095 = vpack.c.b16 %v819, %v815
    %v1096 = vpack.c.b16 %v820, %v816
    %v1097 = vpack.c.b16 %v821, %v817
    %v1098 = vpack.c.b16 %v826, %v822
    %v1099 = vpack.c.b16 %v827, %v823
    %v1100 = vpack.c.b16 %v828, %v824
    %v1101 = vpack.c.b16 %v829, %v825
    %v1102 = vpack.c.b16 %v834, %v830
    %v1103 = vpack.c.b16 %v835, %v831
    %v1104 = vpack.c.b16 %v836, %v832
    %v1105 = vpack.c.b16 %v837, %v833
    %v1106 = vpack.c.b16 %v842, %v838
    %v1107 = vpack.c.b16 %v843, %v839
    %v1108 = vpack.c.b16 %v844, %v840
    %v1109 = vpack.c.b16 %v845, %v841
    %v1110 = vpack.c.b16 %v850, %v846
    %v1111 = vpack.c.b16 %v851, %v847
    %v1112 = vpack.c.b16 %v852, %v848
    %v1113 = vpack.c.b16 %v853, %v849
    %v1114 = vpack.c.b16 %v858, %v854
    %v1115 = vpack.c.b16 %v859, %v855
    %v1116 = vpack.c.b16 %v860, %v856
    %v1117 = vpack.c.b16 %v861, %v857
    %v1118 = vpack.c.b16 %v866, %v862
    %v1119 = vpack.c.b16 %v867, %v863
    %v1120 = vpack.c.b16 %v868, %v864
    %v1121 = vpack.c.b16 %v869, %v865
    %v1122 = vpack.c.b16 %v874, %v870
    %v1123 = vpack.c.b16 %v875, %v871
    %v1124 = vpack.c.b16 %v876, %v872
    %v1125 = vpack.c.b16 %v877, %v873
    %v1126 = vpack.c.b16 %v882, %v878
    %v1127 = vpack.c.b16 %v883, %v879
    %v1128 = vpack.c.b16 %v884, %v880
    %v1129 = vpack.c.b16 %v885, %v881
    %v1130 = vpack.c.b16 %v890, %v886
    %v1131 = vpack.c.b16 %v891, %v887
    %v1132 = vpack.c.b16 %v892, %v888
    %v1133 = vpack.c.b16 %v893, %v889
    %v1134 = vpack.c.b16 %v898, %v894
    %v1135 = vpack.c.b16 %v899, %v895
    %v1136 = vpack.c.b16 %v900, %v896
    %v1137 = vpack.c.b16 %v901, %v897
    %v1138 = vpack.c.b16 %v906, %v902
    %v1139 = vpack.c.b16 %v907, %v903
    %v1140 = vpack.c.b16 %v908, %v904
    %v1141 = vpack.c.b16 %v909, %v905
    %v1142 = vpack.c.b16 %v914, %v910
    %v1143 = vpack.c.b16 %v915, %v911
    %v1144 = vpack.c.b16 %v916, %v912
    %v1145 = vpack.c.b16 %v917, %v913
    %v1146 = vpack.c.b16 %v922, %v918
    %v1147 = vpack.c.b16 %v923, %v919
    %v1148 = vpack.c.b16 %v924, %v920
    %v1149 = vpack.c.b16 %v925, %v921
    %v1150 = vpack.c.b16 %v930, %v926
    %v1151 = vpack.c.b16 %v931, %v927
    %v1152 = vpack.c.b16 %v932, %v928
    %v1153 = vpack.c.b16 %v933, %v929
    %v1154 = vpack.c.b16 %v938, %v934
    %v1155 = vpack.c.b16 %v939, %v935
    %v1156 = vpack.c.b16 %v940, %v936
    %v1157 = vpack.c.b16 %v941, %v937
    %v1158 = vpack.c.b16 %v946, %v942
    %v1159 = vpack.c.b16 %v947, %v943
    %v1160 = vpack.c.b16 %v948, %v944
    %v1161 = vpack.c.b16 %v949, %v945
    %v1162 = vpack.c.b16 %v954, %v950
    %v1163 = vpack.c.b16 %v955, %v951
    %v1164 = vpack.c.b16 %v956, %v952
    %v1165 = vpack.c.b16 %v957, %v953
    %v1166 = vpack.c.b16 %v962, %v958
    %v1167 = vpack.c.b16 %v963, %v959
    %v1168 = vpack.c.b16 %v964, %v960
    %v1169 = vpack.c.b16 %v965, %v961
    %v1170 = vpack.c.b16 %v970, %v966
    %v1171 = vpack.c.b16 %v971, %v967
    %v1172 = vpack.c.b16 %v972, %v968
    %v1173 = vpack.c.b16 %v973, %v969
    %v1174 = vpack.c.b16 %v978, %v974
    %v1175 = vpack.c.b16 %v979, %v975
    %v1176 = vpack.c.b16 %v980, %v976
    %v1177 = vpack.c.b16 %v981, %v977
    %vm1374 = vcmask 130048
    %v1376 = vsel %vm1374, %v166, 0
    %v1379 = vsel %vm1374, %v173, 0
    %v1382 = vsel %vm1374, %v180, 0
    %v1385 = vsel %vm1374, %v187, 0
    %1387 = vmatpush.bf16.msra.mxu0 %v1010
    %1388 = vmatpush.bf16.msra.mxu0 %v1006
    %1389 = vmatpush.bf16.msra.mxu0 %v1002
    %1390 = vmatpush.bf16.msra.mxu0 %v998
    %1391 = vmatpush.bf16.msra.mxu0 %v994
    %1392 = vmatpush.bf16.msra.mxu0 %v990
    %1393 = vmatpush.bf16.msra.mxu0 %v986
    %1394 = vmatpush.bf16.msra.mxu0 %v982
    %1395 = vmatmul.bf16.gmra.mxu0 %v160
    %v1396 = vpop.f32.mrf.mxu0
    %v1397 = vadd.f32 %v386, %v1396
    %v1398 = vpop.f32.mrf.mxu0
    %v1399 = vadd.f32 %v386, %v1398
    %1400 = vmatmul.bf16.gmra.mxu0 %v167
    %v1401 = vpop.f32.mrf.mxu0
    %v1402 = vadd.f32 %v386, %v1401
    %v1403 = vpop.f32.mrf.mxu0
    %v1404 = vadd.f32 %v386, %v1403
    %1405 = vmatmul.bf16.gmra.mxu0 %v174
    %v1406 = vpop.f32.mrf.mxu0
    %v1407 = vadd.f32 %v386, %v1406
    %v1408 = vpop.f32.mrf.mxu0
    %v1409 = vadd.f32 %v386, %v1408
    %1410 = vmatmul.bf16.gmra.mxu0 %v181
    %v1411 = vpop.f32.mrf.mxu0
    %v1412 = vadd.f32 %v386, %v1411
    %v1413 = vpop.f32.mrf.mxu0
    %v1414 = vadd.f32 %v386, %v1413
    %1415 = vdwg.mxu0
    %1416 = vmatpush.bf16.msra.mxu0 %v1042
    %1417 = vmatpush.bf16.msra.mxu0 %v1038
    %1418 = vmatpush.bf16.msra.mxu0 %v1034
    %1419 = vmatpush.bf16.msra.mxu0 %v1030
    %1420 = vmatpush.bf16.msra.mxu0 %v1026
    %1421 = vmatpush.bf16.msra.mxu0 %v1022
    %1422 = vmatpush.bf16.msra.mxu0 %v1018
    %1423 = vmatpush.bf16.msra.mxu0 %v1014
    %1424 = vmatmul.bf16.gmra.mxu0 %v161
    %v1425 = vpop.f32.mrf.mxu0
    %v1426 = vadd.f32 %v1397, %v1425
    %v1427 = vpop.f32.mrf.mxu0
    %v1428 = vadd.f32 %v1399, %v1427
    %1429 = vmatmul.bf16.gmra.mxu0 %v168
    %v1430 = vpop.f32.mrf.mxu0
    %v1431 = vadd.f32 %v1402, %v1430
    %v1432 = vpop.f32.mrf.mxu0
    %v1433 = vadd.f32 %v1404, %v1432
    %1434 = vmatmul.bf16.gmra.mxu0 %v175
    %v1435 = vpop.f32.mrf.mxu0
    %v1436 = vadd.f32 %v1407, %v1435
    %v1437 = vpop.f32.mrf.mxu0
    %v1438 = vadd.f32 %v1409, %v1437
    %1439 = vmatmul.bf16.gmra.mxu0 %v182
    %v1440 = vpop.f32.mrf.mxu0
    %v1441 = vadd.f32 %v1412, %v1440
    %v1442 = vpop.f32.mrf.mxu0
    %v1443 = vadd.f32 %v1414, %v1442
    %1444 = vdwg.mxu0
    %1445 = vmatpush.bf16.msra.mxu0 %v1074
    %1446 = vmatpush.bf16.msra.mxu0 %v1070
    %1447 = vmatpush.bf16.msra.mxu0 %v1066
    %1448 = vmatpush.bf16.msra.mxu0 %v1062
    %1449 = vmatpush.bf16.msra.mxu0 %v1058
    %1450 = vmatpush.bf16.msra.mxu0 %v1054
    %1451 = vmatpush.bf16.msra.mxu0 %v1050
    %1452 = vmatpush.bf16.msra.mxu0 %v1046
    %1453 = vmatmul.bf16.gmra.mxu0 %v162
    %v1454 = vpop.f32.mrf.mxu0
    %v1455 = vadd.f32 %v1426, %v1454
    %v1456 = vpop.f32.mrf.mxu0
    %v1457 = vadd.f32 %v1428, %v1456
    %1458 = vmatmul.bf16.gmra.mxu0 %v169
    %v1459 = vpop.f32.mrf.mxu0
    %v1460 = vadd.f32 %v1431, %v1459
    %v1461 = vpop.f32.mrf.mxu0
    %v1462 = vadd.f32 %v1433, %v1461
    %1463 = vmatmul.bf16.gmra.mxu0 %v176
    %v1464 = vpop.f32.mrf.mxu0
    %v1465 = vadd.f32 %v1436, %v1464
    %v1466 = vpop.f32.mrf.mxu0
    %v1467 = vadd.f32 %v1438, %v1466
    %1468 = vmatmul.bf16.gmra.mxu0 %v183
    %v1469 = vpop.f32.mrf.mxu0
    %v1470 = vadd.f32 %v1441, %v1469
    %v1471 = vpop.f32.mrf.mxu0
    %v1472 = vadd.f32 %v1443, %v1471
    %1473 = vdwg.mxu0
    %1474 = vmatpush.bf16.msra.mxu0 %v1106
    %1475 = vmatpush.bf16.msra.mxu0 %v1102
    %1476 = vmatpush.bf16.msra.mxu0 %v1098
    %1477 = vmatpush.bf16.msra.mxu0 %v1094
    %1478 = vmatpush.bf16.msra.mxu0 %v1090
    %1479 = vmatpush.bf16.msra.mxu0 %v1086
    %1480 = vmatpush.bf16.msra.mxu0 %v1082
    %1481 = vmatpush.bf16.msra.mxu0 %v1078
    %1482 = vmatmul.bf16.gmra.mxu0 %v163
    %v1483 = vpop.f32.mrf.mxu0
    %v1484 = vadd.f32 %v1455, %v1483
    %v1485 = vpop.f32.mrf.mxu0
    %v1486 = vadd.f32 %v1457, %v1485
    %1487 = vmatmul.bf16.gmra.mxu0 %v170
    %v1488 = vpop.f32.mrf.mxu0
    %v1489 = vadd.f32 %v1460, %v1488
    %v1490 = vpop.f32.mrf.mxu0
    %v1491 = vadd.f32 %v1462, %v1490
    %1492 = vmatmul.bf16.gmra.mxu0 %v177
    %v1493 = vpop.f32.mrf.mxu0
    %v1494 = vadd.f32 %v1465, %v1493
    %v1495 = vpop.f32.mrf.mxu0
    %v1496 = vadd.f32 %v1467, %v1495
    %1497 = vmatmul.bf16.gmra.mxu0 %v184
    %v1498 = vpop.f32.mrf.mxu0
    %v1499 = vadd.f32 %v1470, %v1498
    %v1500 = vpop.f32.mrf.mxu0
    %v1501 = vadd.f32 %v1472, %v1500
    %1502 = vdwg.mxu0
    %1503 = vmatpush.bf16.msra.mxu0 %v1138
    %1504 = vmatpush.bf16.msra.mxu0 %v1134
    %1505 = vmatpush.bf16.msra.mxu0 %v1130
    %1506 = vmatpush.bf16.msra.mxu0 %v1126
    %1507 = vmatpush.bf16.msra.mxu0 %v1122
    %1508 = vmatpush.bf16.msra.mxu0 %v1118
    %1509 = vmatpush.bf16.msra.mxu0 %v1114
    %1510 = vmatpush.bf16.msra.mxu0 %v1110
    %1511 = vmatmul.bf16.gmra.mxu0 %v164
    %v1512 = vpop.f32.mrf.mxu0
    %v1513 = vadd.f32 %v1484, %v1512
    %v1514 = vpop.f32.mrf.mxu0
    %v1515 = vadd.f32 %v1486, %v1514
    %1516 = vmatmul.bf16.gmra.mxu0 %v171
    %v1517 = vpop.f32.mrf.mxu0
    %v1518 = vadd.f32 %v1489, %v1517
    %v1519 = vpop.f32.mrf.mxu0
    %v1520 = vadd.f32 %v1491, %v1519
    %1521 = vmatmul.bf16.gmra.mxu0 %v178
    %v1522 = vpop.f32.mrf.mxu0
    %v1523 = vadd.f32 %v1494, %v1522
    %v1524 = vpop.f32.mrf.mxu0
    %v1525 = vadd.f32 %v1496, %v1524
    %1526 = vmatmul.bf16.gmra.mxu0 %v185
    %v1527 = vpop.f32.mrf.mxu0
    %v1528 = vadd.f32 %v1499, %v1527
    %v1529 = vpop.f32.mrf.mxu0
    %v1530 = vadd.f32 %v1501, %v1529
    %1531 = vdwg.mxu0
    %1532 = vmatpush.bf16.msra.mxu0 %v1170
    %1533 = vmatpush.bf16.msra.mxu0 %v1166
    %1534 = vmatpush.bf16.msra.mxu0 %v1162
    %1535 = vmatpush.bf16.msra.mxu0 %v1158
    %1536 = vmatpush.bf16.msra.mxu0 %v1154
    %1537 = vmatpush.bf16.msra.mxu0 %v1150
    %1538 = vmatpush.bf16.msra.mxu0 %v1146
    %1539 = vmatpush.bf16.msra.mxu0 %v1142
    %1540 = vmatmul.bf16.gmra.mxu0 %v165
    %v1541 = vpop.f32.mrf.mxu0
    %v1542 = vadd.f32 %v1513, %v1541
    %v1543 = vpop.f32.mrf.mxu0
    %v1544 = vadd.f32 %v1515, %v1543
    %1545 = vmatmul.bf16.gmra.mxu0 %v172
    %v1546 = vpop.f32.mrf.mxu0
    %v1547 = vadd.f32 %v1518, %v1546
    %v1548 = vpop.f32.mrf.mxu0
    %v1549 = vadd.f32 %v1520, %v1548
    %1550 = vmatmul.bf16.gmra.mxu0 %v179
    %v1551 = vpop.f32.mrf.mxu0
    %v1552 = vadd.f32 %v1523, %v1551
    %v1553 = vpop.f32.mrf.mxu0
    %v1554 = vadd.f32 %v1525, %v1553
    %1555 = vmatmul.bf16.gmra.mxu0 %v186
    %v1556 = vpop.f32.mrf.mxu0
    %v1557 = vadd.f32 %v1528, %v1556
    %v1558 = vpop.f32.mrf.mxu0
    %v1559 = vadd.f32 %v1530, %v1558
    %1560 = vdwg.mxu0
    %1561 = vmatpush.bf16.msra.mxu0 0
    %1562 = vmatpush.bf16.msra.mxu0 0
    %1563 = vmatpush.bf16.msra.mxu0 0
    %1564 = vmatpush.bf16.msra.mxu0 0
    %1565 = vmatpush.bf16.msra.mxu0 0
    %1566 = vmatpush.bf16.msra.mxu0 0
    %1567 = vmatpush.bf16.msra.mxu0 0
    %1568 = vmatpush.bf16.msra.mxu0 %v1174
    %1569 = vmatmul.bf16.gmra.mxu0 %v1376
    %v1570 = vpop.f32.mrf.mxu0
    %v1571 = vadd.f32 %v1542, %v1570
    %v1572 = vpop.f32.mrf.mxu0
    %v1573 = vadd.f32 %v1544, %v1572
    %1574 = vmatmul.bf16.gmra.mxu0 %v1379
    %v1575 = vpop.f32.mrf.mxu0
    %v1576 = vadd.f32 %v1547, %v1575
    %v1577 = vpop.f32.mrf.mxu0
    %v1578 = vadd.f32 %v1549, %v1577
    %1579 = vmatmul.bf16.gmra.mxu0 %v1382
    %v1580 = vpop.f32.mrf.mxu0
    %v1581 = vadd.f32 %v1552, %v1580
    %v1582 = vpop.f32.mrf.mxu0
    %v1583 = vadd.f32 %v1554, %v1582
    %1584 = vmatmul.bf16.gmra.mxu0 %v1385
    %v1585 = vpop.f32.mrf.mxu0
    %v1586 = vadd.f32 %v1557, %v1585
    %v1587 = vpop.f32.mrf.mxu0
    %v1588 = vadd.f32 %v1559, %v1587
    %1589 = vdwg.mxu0
    %1590 = vmatpush.bf16.msra.mxu0 %v1011
    %1591 = vmatpush.bf16.msra.mxu0 %v1007
    %1592 = vmatpush.bf16.msra.mxu0 %v1003
    %1593 = vmatpush.bf16.msra.mxu0 %v999
    %1594 = vmatpush.bf16.msra.mxu0 %v995
    %1595 = vmatpush.bf16.msra.mxu0 %v991
    %1596 = vmatpush.bf16.msra.mxu0 %v987
    %1597 = vmatpush.bf16.msra.mxu0 %v983
    %1598 = vmatmul.bf16.gmra.mxu0 %v160
    %v1599 = vpop.f32.mrf.mxu0
    %v1600 = vadd.f32 %v387, %v1599
    %v1601 = vpop.f32.mrf.mxu0
    %v1602 = vadd.f32 %v387, %v1601
    %1603 = vmatmul.bf16.gmra.mxu0 %v167
    %v1604 = vpop.f32.mrf.mxu0
    %v1605 = vadd.f32 %v387, %v1604
    %v1606 = vpop.f32.mrf.mxu0
    %v1607 = vadd.f32 %v387, %v1606
    %1608 = vmatmul.bf16.gmra.mxu0 %v174
    %v1609 = vpop.f32.mrf.mxu0
    %v1610 = vadd.f32 %v387, %v1609
    %v1611 = vpop.f32.mrf.mxu0
    %v1612 = vadd.f32 %v387, %v1611
    %1613 = vmatmul.bf16.gmra.mxu0 %v181
    %v1614 = vpop.f32.mrf.mxu0
    %v1615 = vadd.f32 %v387, %v1614
    %v1616 = vpop.f32.mrf.mxu0
    %v1617 = vadd.f32 %v387, %v1616
    %1618 = vdwg.mxu0
    %1619 = vmatpush.bf16.msra.mxu0 %v1043
    %1620 = vmatpush.bf16.msra.mxu0 %v1039
    %1621 = vmatpush.bf16.msra.mxu0 %v1035
    %1622 = vmatpush.bf16.msra.mxu0 %v1031
    %1623 = vmatpush.bf16.msra.mxu0 %v1027
    %1624 = vmatpush.bf16.msra.mxu0 %v1023
    %1625 = vmatpush.bf16.msra.mxu0 %v1019
    %1626 = vmatpush.bf16.msra.mxu0 %v1015
    %1627 = vmatmul.bf16.gmra.mxu0 %v161
    %v1628 = vpop.f32.mrf.mxu0
    %v1629 = vadd.f32 %v1600, %v1628
    %v1630 = vpop.f32.mrf.mxu0
    %v1631 = vadd.f32 %v1602, %v1630
    %1632 = vmatmul.bf16.gmra.mxu0 %v168
    %v1633 = vpop.f32.mrf.mxu0
    %v1634 = vadd.f32 %v1605, %v1633
    %v1635 = vpop.f32.mrf.mxu0
    %v1636 = vadd.f32 %v1607, %v1635
    %1637 = vmatmul.bf16.gmra.mxu0 %v175
    %v1638 = vpop.f32.mrf.mxu0
    %v1639 = vadd.f32 %v1610, %v1638
    %v1640 = vpop.f32.mrf.mxu0
    %v1641 = vadd.f32 %v1612, %v1640
    %1642 = vmatmul.bf16.gmra.mxu0 %v182
    %v1643 = vpop.f32.mrf.mxu0
    %v1644 = vadd.f32 %v1615, %v1643
    %v1645 = vpop.f32.mrf.mxu0
    %v1646 = vadd.f32 %v1617, %v1645
    %1647 = vdwg.mxu0
    %1648 = vmatpush.bf16.msra.mxu0 %v1075
    %1649 = vmatpush.bf16.msra.mxu0 %v1071
    %1650 = vmatpush.bf16.msra.mxu0 %v1067
    %1651 = vmatpush.bf16.msra.mxu0 %v1063
    %1652 = vmatpush.bf16.msra.mxu0 %v1059
    %1653 = vmatpush.bf16.msra.mxu0 %v1055
    %1654 = vmatpush.bf16.msra.mxu0 %v1051
    %1655 = vmatpush.bf16.msra.mxu0 %v1047
    %1656 = vmatmul.bf16.gmra.mxu0 %v162
    %v1657 = vpop.f32.mrf.mxu0
    %v1658 = vadd.f32 %v1629, %v1657
    %v1659 = vpop.f32.mrf.mxu0
    %v1660 = vadd.f32 %v1631, %v1659
    %1661 = vmatmul.bf16.gmra.mxu0 %v169
    %v1662 = vpop.f32.mrf.mxu0
    %v1663 = vadd.f32 %v1634, %v1662
    %v1664 = vpop.f32.mrf.mxu0
    %v1665 = vadd.f32 %v1636, %v1664
    %1666 = vmatmul.bf16.gmra.mxu0 %v176
    %v1667 = vpop.f32.mrf.mxu0
    %v1668 = vadd.f32 %v1639, %v1667
    %v1669 = vpop.f32.mrf.mxu0
    %v1670 = vadd.f32 %v1641, %v1669
    %1671 = vmatmul.bf16.gmra.mxu0 %v183
    %v1672 = vpop.f32.mrf.mxu0
    %v1673 = vadd.f32 %v1644, %v1672
    %v1674 = vpop.f32.mrf.mxu0
    %v1675 = vadd.f32 %v1646, %v1674
    %1676 = vdwg.mxu0
    %1677 = vmatpush.bf16.msra.mxu0 %v1107
    %1678 = vmatpush.bf16.msra.mxu0 %v1103
    %1679 = vmatpush.bf16.msra.mxu0 %v1099
    %1680 = vmatpush.bf16.msra.mxu0 %v1095
    %1681 = vmatpush.bf16.msra.mxu0 %v1091
    %1682 = vmatpush.bf16.msra.mxu0 %v1087
    %1683 = vmatpush.bf16.msra.mxu0 %v1083
    %1684 = vmatpush.bf16.msra.mxu0 %v1079
    %1685 = vmatmul.bf16.gmra.mxu0 %v163
    %v1686 = vpop.f32.mrf.mxu0
    %v1687 = vadd.f32 %v1658, %v1686
    %v1688 = vpop.f32.mrf.mxu0
    %v1689 = vadd.f32 %v1660, %v1688
    %1690 = vmatmul.bf16.gmra.mxu0 %v170
    %v1691 = vpop.f32.mrf.mxu0
    %v1692 = vadd.f32 %v1663, %v1691
    %v1693 = vpop.f32.mrf.mxu0
    %v1694 = vadd.f32 %v1665, %v1693
    %1695 = vmatmul.bf16.gmra.mxu0 %v177
    %v1696 = vpop.f32.mrf.mxu0
    %v1697 = vadd.f32 %v1668, %v1696
    %v1698 = vpop.f32.mrf.mxu0
    %v1699 = vadd.f32 %v1670, %v1698
    %1700 = vmatmul.bf16.gmra.mxu0 %v184
    %v1701 = vpop.f32.mrf.mxu0
    %v1702 = vadd.f32 %v1673, %v1701
    %v1703 = vpop.f32.mrf.mxu0
    %v1704 = vadd.f32 %v1675, %v1703
    %1705 = vdwg.mxu0
    %1706 = vmatpush.bf16.msra.mxu0 %v1139
    %1707 = vmatpush.bf16.msra.mxu0 %v1135
    %1708 = vmatpush.bf16.msra.mxu0 %v1131
    %1709 = vmatpush.bf16.msra.mxu0 %v1127
    %1710 = vmatpush.bf16.msra.mxu0 %v1123
    %1711 = vmatpush.bf16.msra.mxu0 %v1119
    %1712 = vmatpush.bf16.msra.mxu0 %v1115
    %1713 = vmatpush.bf16.msra.mxu0 %v1111
    %1714 = vmatmul.bf16.gmra.mxu0 %v164
    %v1715 = vpop.f32.mrf.mxu0
    %v1716 = vadd.f32 %v1687, %v1715
    %v1717 = vpop.f32.mrf.mxu0
    %v1718 = vadd.f32 %v1689, %v1717
    %1719 = vmatmul.bf16.gmra.mxu0 %v171
    %v1720 = vpop.f32.mrf.mxu0
    %v1721 = vadd.f32 %v1692, %v1720
    %v1722 = vpop.f32.mrf.mxu0
    %v1723 = vadd.f32 %v1694, %v1722
    %1724 = vmatmul.bf16.gmra.mxu0 %v178
    %v1725 = vpop.f32.mrf.mxu0
    %v1726 = vadd.f32 %v1697, %v1725
    %v1727 = vpop.f32.mrf.mxu0
    %v1728 = vadd.f32 %v1699, %v1727
    %1729 = vmatmul.bf16.gmra.mxu0 %v185
    %v1730 = vpop.f32.mrf.mxu0
    %v1731 = vadd.f32 %v1702, %v1730
    %v1732 = vpop.f32.mrf.mxu0
    %v1733 = vadd.f32 %v1704, %v1732
    %1734 = vdwg.mxu0
    %1735 = vmatpush.bf16.msra.mxu0 %v1171
    %1736 = vmatpush.bf16.msra.mxu0 %v1167
    %1737 = vmatpush.bf16.msra.mxu0 %v1163
    %1738 = vmatpush.bf16.msra.mxu0 %v1159
    %1739 = vmatpush.bf16.msra.mxu0 %v1155
    %1740 = vmatpush.bf16.msra.mxu0 %v1151
    %1741 = vmatpush.bf16.msra.mxu0 %v1147
    %1742 = vmatpush.bf16.msra.mxu0 %v1143
    %1743 = vmatmul.bf16.gmra.mxu0 %v165
    %v1744 = vpop.f32.mrf.mxu0
    %v1745 = vadd.f32 %v1716, %v1744
    %v1746 = vpop.f32.mrf.mxu0
    %v1747 = vadd.f32 %v1718, %v1746
    %1748 = vmatmul.bf16.gmra.mxu0 %v172
    %v1749 = vpop.f32.mrf.mxu0
    %v1750 = vadd.f32 %v1721, %v1749
    %v1751 = vpop.f32.mrf.mxu0
    %v1752 = vadd.f32 %v1723, %v1751
    %1753 = vmatmul.bf16.gmra.mxu0 %v179
    %v1754 = vpop.f32.mrf.mxu0
    %v1755 = vadd.f32 %v1726, %v1754
    %v1756 = vpop.f32.mrf.mxu0
    %v1757 = vadd.f32 %v1728, %v1756
    %1758 = vmatmul.bf16.gmra.mxu0 %v186
    %v1759 = vpop.f32.mrf.mxu0
    %v1760 = vadd.f32 %v1731, %v1759
    %v1761 = vpop.f32.mrf.mxu0
    %v1762 = vadd.f32 %v1733, %v1761
    %1763 = vdwg.mxu0
    %1764 = vmatpush.bf16.msra.mxu0 0
    %1765 = vmatpush.bf16.msra.mxu0 0
    %1766 = vmatpush.bf16.msra.mxu0 0
    %1767 = vmatpush.bf16.msra.mxu0 0
    %1768 = vmatpush.bf16.msra.mxu0 0
    %1769 = vmatpush.bf16.msra.mxu0 0
    %1770 = vmatpush.bf16.msra.mxu0 0
    %1771 = vmatpush.bf16.msra.mxu0 %v1175
    %1772 = vmatmul.bf16.gmra.mxu0 %v1376
    %v1773 = vpop.f32.mrf.mxu0
    %v1774 = vadd.f32 %v1745, %v1773
    %v1775 = vpop.f32.mrf.mxu0
    %v1776 = vadd.f32 %v1747, %v1775
    %1777 = vmatmul.bf16.gmra.mxu0 %v1379
    %v1778 = vpop.f32.mrf.mxu0
    %v1779 = vadd.f32 %v1750, %v1778
    %v1780 = vpop.f32.mrf.mxu0
    %v1781 = vadd.f32 %v1752, %v1780
    %1782 = vmatmul.bf16.gmra.mxu0 %v1382
    %v1783 = vpop.f32.mrf.mxu0
    %v1784 = vadd.f32 %v1755, %v1783
    %v1785 = vpop.f32.mrf.mxu0
    %v1786 = vadd.f32 %v1757, %v1785
    %1787 = vmatmul.bf16.gmra.mxu0 %v1385
    %v1788 = vpop.f32.mrf.mxu0
    %v1789 = vadd.f32 %v1760, %v1788
    %v1790 = vpop.f32.mrf.mxu0
    %v1791 = vadd.f32 %v1762, %v1790
    %1792 = vdwg.mxu0
    %1793 = vmatpush.bf16.msra.mxu0 %v1012
    %1794 = vmatpush.bf16.msra.mxu0 %v1008
    %1795 = vmatpush.bf16.msra.mxu0 %v1004
    %1796 = vmatpush.bf16.msra.mxu0 %v1000
    %1797 = vmatpush.bf16.msra.mxu0 %v996
    %1798 = vmatpush.bf16.msra.mxu0 %v992
    %1799 = vmatpush.bf16.msra.mxu0 %v988
    %1800 = vmatpush.bf16.msra.mxu0 %v984
    %1801 = vmatmul.bf16.gmra.mxu0 %v160
    %v1802 = vpop.f32.mrf.mxu0
    %v1803 = vadd.f32 %v388, %v1802
    %v1804 = vpop.f32.mrf.mxu0
    %v1805 = vadd.f32 %v388, %v1804
    %1806 = vmatmul.bf16.gmra.mxu0 %v167
    %v1807 = vpop.f32.mrf.mxu0
    %v1808 = vadd.f32 %v388, %v1807
    %v1809 = vpop.f32.mrf.mxu0
    %v1810 = vadd.f32 %v388, %v1809
    %1811 = vmatmul.bf16.gmra.mxu0 %v174
    %v1812 = vpop.f32.mrf.mxu0
    %v1813 = vadd.f32 %v388, %v1812
    %v1814 = vpop.f32.mrf.mxu0
    %v1815 = vadd.f32 %v388, %v1814
    %1816 = vmatmul.bf16.gmra.mxu0 %v181
    %v1817 = vpop.f32.mrf.mxu0
    %v1818 = vadd.f32 %v388, %v1817
    %v1819 = vpop.f32.mrf.mxu0
    %v1820 = vadd.f32 %v388, %v1819
    %1821 = vdwg.mxu0
    %1822 = vmatpush.bf16.msra.mxu0 %v1044
    %1823 = vmatpush.bf16.msra.mxu0 %v1040
    %1824 = vmatpush.bf16.msra.mxu0 %v1036
    %1825 = vmatpush.bf16.msra.mxu0 %v1032
    %1826 = vmatpush.bf16.msra.mxu0 %v1028
    %1827 = vmatpush.bf16.msra.mxu0 %v1024
    %1828 = vmatpush.bf16.msra.mxu0 %v1020
    %1829 = vmatpush.bf16.msra.mxu0 %v1016
    %1830 = vmatmul.bf16.gmra.mxu0 %v161
    %v1831 = vpop.f32.mrf.mxu0
    %v1832 = vadd.f32 %v1803, %v1831
    %v1833 = vpop.f32.mrf.mxu0
    %v1834 = vadd.f32 %v1805, %v1833
    %1835 = vmatmul.bf16.gmra.mxu0 %v168
    %v1836 = vpop.f32.mrf.mxu0
    %v1837 = vadd.f32 %v1808, %v1836
    %v1838 = vpop.f32.mrf.mxu0
    %v1839 = vadd.f32 %v1810, %v1838
    %1840 = vmatmul.bf16.gmra.mxu0 %v175
    %v1841 = vpop.f32.mrf.mxu0
    %v1842 = vadd.f32 %v1813, %v1841
    %v1843 = vpop.f32.mrf.mxu0
    %v1844 = vadd.f32 %v1815, %v1843
    %1845 = vmatmul.bf16.gmra.mxu0 %v182
    %v1846 = vpop.f32.mrf.mxu0
    %v1847 = vadd.f32 %v1818, %v1846
    %v1848 = vpop.f32.mrf.mxu0
    %v1849 = vadd.f32 %v1820, %v1848
    %1850 = vdwg.mxu0
    %1851 = vmatpush.bf16.msra.mxu0 %v1076
    %1852 = vmatpush.bf16.msra.mxu0 %v1072
    %1853 = vmatpush.bf16.msra.mxu0 %v1068
    %1854 = vmatpush.bf16.msra.mxu0 %v1064
    %1855 = vmatpush.bf16.msra.mxu0 %v1060
    %1856 = vmatpush.bf16.msra.mxu0 %v1056
    %1857 = vmatpush.bf16.msra.mxu0 %v1052
    %1858 = vmatpush.bf16.msra.mxu0 %v1048
    %1859 = vmatmul.bf16.gmra.mxu0 %v162
    %v1860 = vpop.f32.mrf.mxu0
    %v1861 = vadd.f32 %v1832, %v1860
    %v1862 = vpop.f32.mrf.mxu0
    %v1863 = vadd.f32 %v1834, %v1862
    %1864 = vmatmul.bf16.gmra.mxu0 %v169
    %v1865 = vpop.f32.mrf.mxu0
    %v1866 = vadd.f32 %v1837, %v1865
    %v1867 = vpop.f32.mrf.mxu0
    %v1868 = vadd.f32 %v1839, %v1867
    %1869 = vmatmul.bf16.gmra.mxu0 %v176
    %v1870 = vpop.f32.mrf.mxu0
    %v1871 = vadd.f32 %v1842, %v1870
    %v1872 = vpop.f32.mrf.mxu0
    %v1873 = vadd.f32 %v1844, %v1872
    %1874 = vmatmul.bf16.gmra.mxu0 %v183
    %v1875 = vpop.f32.mrf.mxu0
    %v1876 = vadd.f32 %v1847, %v1875
    %v1877 = vpop.f32.mrf.mxu0
    %v1878 = vadd.f32 %v1849, %v1877
    %1879 = vdwg.mxu0
    %1880 = vmatpush.bf16.msra.mxu0 %v1108
    %1881 = vmatpush.bf16.msra.mxu0 %v1104
    %1882 = vmatpush.bf16.msra.mxu0 %v1100
    %1883 = vmatpush.bf16.msra.mxu0 %v1096
    %1884 = vmatpush.bf16.msra.mxu0 %v1092
    %1885 = vmatpush.bf16.msra.mxu0 %v1088
    %1886 = vmatpush.bf16.msra.mxu0 %v1084
    %1887 = vmatpush.bf16.msra.mxu0 %v1080
    %1888 = vmatmul.bf16.gmra.mxu0 %v163
    %v1889 = vpop.f32.mrf.mxu0
    %v1890 = vadd.f32 %v1861, %v1889
    %v1891 = vpop.f32.mrf.mxu0
    %v1892 = vadd.f32 %v1863, %v1891
    %1893 = vmatmul.bf16.gmra.mxu0 %v170
    %v1894 = vpop.f32.mrf.mxu0
    %v1895 = vadd.f32 %v1866, %v1894
    %v1896 = vpop.f32.mrf.mxu0
    %v1897 = vadd.f32 %v1868, %v1896
    %1898 = vmatmul.bf16.gmra.mxu0 %v177
    %v1899 = vpop.f32.mrf.mxu0
    %v1900 = vadd.f32 %v1871, %v1899
    %v1901 = vpop.f32.mrf.mxu0
    %v1902 = vadd.f32 %v1873, %v1901
    %1903 = vmatmul.bf16.gmra.mxu0 %v184
    %v1904 = vpop.f32.mrf.mxu0
    %v1905 = vadd.f32 %v1876, %v1904
    %v1906 = vpop.f32.mrf.mxu0
    %v1907 = vadd.f32 %v1878, %v1906
    %1908 = vdwg.mxu0
    %1909 = vmatpush.bf16.msra.mxu0 %v1140
    %1910 = vmatpush.bf16.msra.mxu0 %v1136
    %1911 = vmatpush.bf16.msra.mxu0 %v1132
    %1912 = vmatpush.bf16.msra.mxu0 %v1128
    %1913 = vmatpush.bf16.msra.mxu0 %v1124
    %1914 = vmatpush.bf16.msra.mxu0 %v1120
    %1915 = vmatpush.bf16.msra.mxu0 %v1116
    %1916 = vmatpush.bf16.msra.mxu0 %v1112
    %1917 = vmatmul.bf16.gmra.mxu0 %v164
    %v1918 = vpop.f32.mrf.mxu0
    %v1919 = vadd.f32 %v1890, %v1918
    %v1920 = vpop.f32.mrf.mxu0
    %v1921 = vadd.f32 %v1892, %v1920
    %1922 = vmatmul.bf16.gmra.mxu0 %v171
    %v1923 = vpop.f32.mrf.mxu0
    %v1924 = vadd.f32 %v1895, %v1923
    %v1925 = vpop.f32.mrf.mxu0
    %v1926 = vadd.f32 %v1897, %v1925
    %1927 = vmatmul.bf16.gmra.mxu0 %v178
    %v1928 = vpop.f32.mrf.mxu0
    %v1929 = vadd.f32 %v1900, %v1928
    %v1930 = vpop.f32.mrf.mxu0
    %v1931 = vadd.f32 %v1902, %v1930
    %1932 = vmatmul.bf16.gmra.mxu0 %v185
    %v1933 = vpop.f32.mrf.mxu0
    %v1934 = vadd.f32 %v1905, %v1933
    %v1935 = vpop.f32.mrf.mxu0
    %v1936 = vadd.f32 %v1907, %v1935
    %1937 = vdwg.mxu0
    %1938 = vmatpush.bf16.msra.mxu0 %v1172
    %1939 = vmatpush.bf16.msra.mxu0 %v1168
    %1940 = vmatpush.bf16.msra.mxu0 %v1164
    %1941 = vmatpush.bf16.msra.mxu0 %v1160
    %1942 = vmatpush.bf16.msra.mxu0 %v1156
    %1943 = vmatpush.bf16.msra.mxu0 %v1152
    %1944 = vmatpush.bf16.msra.mxu0 %v1148
    %1945 = vmatpush.bf16.msra.mxu0 %v1144
    %1946 = vmatmul.bf16.gmra.mxu0 %v165
    %v1947 = vpop.f32.mrf.mxu0
    %v1948 = vadd.f32 %v1919, %v1947
    %v1949 = vpop.f32.mrf.mxu0
    %v1950 = vadd.f32 %v1921, %v1949
    %1951 = vmatmul.bf16.gmra.mxu0 %v172
    %v1952 = vpop.f32.mrf.mxu0
    %v1953 = vadd.f32 %v1924, %v1952
    %v1954 = vpop.f32.mrf.mxu0
    %v1955 = vadd.f32 %v1926, %v1954
    %1956 = vmatmul.bf16.gmra.mxu0 %v179
    %v1957 = vpop.f32.mrf.mxu0
    %v1958 = vadd.f32 %v1929, %v1957
    %v1959 = vpop.f32.mrf.mxu0
    %v1960 = vadd.f32 %v1931, %v1959
    %1961 = vmatmul.bf16.gmra.mxu0 %v186
    %v1962 = vpop.f32.mrf.mxu0
    %v1963 = vadd.f32 %v1934, %v1962
    %v1964 = vpop.f32.mrf.mxu0
    %v1965 = vadd.f32 %v1936, %v1964
    %1966 = vdwg.mxu0
    %1967 = vmatpush.bf16.msra.mxu0 0
    %1968 = vmatpush.bf16.msra.mxu0 0
    %1969 = vmatpush.bf16.msra.mxu0 0
    %1970 = vmatpush.bf16.msra.mxu0 0
    %1971 = vmatpush.bf16.msra.mxu0 0
    %1972 = vmatpush.bf16.msra.mxu0 0
    %1973 = vmatpush.bf16.msra.mxu0 0
    %1974 = vmatpush.bf16.msra.mxu0 %v1176
    %1975 = vmatmul.bf16.gmra.mxu0 %v1376
    %v1976 = vpop.f32.mrf.mxu0
    %v1977 = vadd.f32 %v1948, %v1976
    %v1978 = vpop.f32.mrf.mxu0
    %v1979 = vadd.f32 %v1950, %v1978
    %1980 = vmatmul.bf16.gmra.mxu0 %v1379
    %v1981 = vpop.f32.mrf.mxu0
    %v1982 = vadd.f32 %v1953, %v1981
    %v1983 = vpop.f32.mrf.mxu0
    %v1984 = vadd.f32 %v1955, %v1983
    %1985 = vmatmul.bf16.gmra.mxu0 %v1382
    %v1986 = vpop.f32.mrf.mxu0
    %v1987 = vadd.f32 %v1958, %v1986
    %v1988 = vpop.f32.mrf.mxu0
    %v1989 = vadd.f32 %v1960, %v1988
    %1990 = vmatmul.bf16.gmra.mxu0 %v1385
    %v1991 = vpop.f32.mrf.mxu0
    %v1992 = vadd.f32 %v1963, %v1991
    %v1993 = vpop.f32.mrf.mxu0
    %v1994 = vadd.f32 %v1965, %v1993
    %1995 = vdwg.mxu0
    %1996 = vmatpush.bf16.msra.mxu0 %v1013
    %1997 = vmatpush.bf16.msra.mxu0 %v1009
    %1998 = vmatpush.bf16.msra.mxu0 %v1005
    %1999 = vmatpush.bf16.msra.mxu0 %v1001
    %2000 = vmatpush.bf16.msra.mxu0 %v997
    %2001 = vmatpush.bf16.msra.mxu0 %v993
    %2002 = vmatpush.bf16.msra.mxu0 %v989
    %2003 = vmatpush.bf16.msra.mxu0 %v985
    %2004 = vmatmul.bf16.gmra.mxu0 %v160
    %v2005 = vpop.f32.mrf.mxu0
    %v2006 = vadd.f32 %v389, %v2005
    %v2007 = vpop.f32.mrf.mxu0
    %v2008 = vadd.f32 %v389, %v2007
    %2009 = vmatmul.bf16.gmra.mxu0 %v167
    %v2010 = vpop.f32.mrf.mxu0
    %v2011 = vadd.f32 %v389, %v2010
    %v2012 = vpop.f32.mrf.mxu0
    %v2013 = vadd.f32 %v389, %v2012
    %2014 = vmatmul.bf16.gmra.mxu0 %v174
    %v2015 = vpop.f32.mrf.mxu0
    %v2016 = vadd.f32 %v389, %v2015
    %v2017 = vpop.f32.mrf.mxu0
    %v2018 = vadd.f32 %v389, %v2017
    %2019 = vmatmul.bf16.gmra.mxu0 %v181
    %v2020 = vpop.f32.mrf.mxu0
    %v2021 = vadd.f32 %v389, %v2020
    %v2022 = vpop.f32.mrf.mxu0
    %v2023 = vadd.f32 %v389, %v2022
    %2024 = vdwg.mxu0
    %2025 = vmatpush.bf16.msra.mxu0 %v1045
    %2026 = vmatpush.bf16.msra.mxu0 %v1041
    %2027 = vmatpush.bf16.msra.mxu0 %v1037
    %2028 = vmatpush.bf16.msra.mxu0 %v1033
    %2029 = vmatpush.bf16.msra.mxu0 %v1029
    %2030 = vmatpush.bf16.msra.mxu0 %v1025
    %2031 = vmatpush.bf16.msra.mxu0 %v1021
    %2032 = vmatpush.bf16.msra.mxu0 %v1017
    %2033 = vmatmul.bf16.gmra.mxu0 %v161
    %v2034 = vpop.f32.mrf.mxu0
    %v2035 = vadd.f32 %v2006, %v2034
    %v2036 = vpop.f32.mrf.mxu0
    %v2037 = vadd.f32 %v2008, %v2036
    %2038 = vmatmul.bf16.gmra.mxu0 %v168
    %v2039 = vpop.f32.mrf.mxu0
    %v2040 = vadd.f32 %v2011, %v2039
    %v2041 = vpop.f32.mrf.mxu0
    %v2042 = vadd.f32 %v2013, %v2041
    %2043 = vmatmul.bf16.gmra.mxu0 %v175
    %v2044 = vpop.f32.mrf.mxu0
    %v2045 = vadd.f32 %v2016, %v2044
    %v2046 = vpop.f32.mrf.mxu0
    %v2047 = vadd.f32 %v2018, %v2046
    %2048 = vmatmul.bf16.gmra.mxu0 %v182
    %v2049 = vpop.f32.mrf.mxu0
    %v2050 = vadd.f32 %v2021, %v2049
    %v2051 = vpop.f32.mrf.mxu0
    %v2052 = vadd.f32 %v2023, %v2051
    %2053 = vdwg.mxu0
    %2054 = vmatpush.bf16.msra.mxu0 %v1077
    %2055 = vmatpush.bf16.msra.mxu0 %v1073
    %2056 = vmatpush.bf16.msra.mxu0 %v1069
    %2057 = vmatpush.bf16.msra.mxu0 %v1065
    %2058 = vmatpush.bf16.msra.mxu0 %v1061
    %2059 = vmatpush.bf16.msra.mxu0 %v1057
    %2060 = vmatpush.bf16.msra.mxu0 %v1053
    %2061 = vmatpush.bf16.msra.mxu0 %v1049
    %2062 = vmatmul.bf16.gmra.mxu0 %v162
    %v2063 = vpop.f32.mrf.mxu0
    %v2064 = vadd.f32 %v2035, %v2063
    %v2065 = vpop.f32.mrf.mxu0
    %v2066 = vadd.f32 %v2037, %v2065
    %2067 = vmatmul.bf16.gmra.mxu0 %v169
    %v2068 = vpop.f32.mrf.mxu0
    %v2069 = vadd.f32 %v2040, %v2068
    %v2070 = vpop.f32.mrf.mxu0
    %v2071 = vadd.f32 %v2042, %v2070
    %2072 = vmatmul.bf16.gmra.mxu0 %v176
    %v2073 = vpop.f32.mrf.mxu0
    %v2074 = vadd.f32 %v2045, %v2073
    %v2075 = vpop.f32.mrf.mxu0
    %v2076 = vadd.f32 %v2047, %v2075
    %2077 = vmatmul.bf16.gmra.mxu0 %v183
    %v2078 = vpop.f32.mrf.mxu0
    %v2079 = vadd.f32 %v2050, %v2078
    %v2080 = vpop.f32.mrf.mxu0
    %v2081 = vadd.f32 %v2052, %v2080
    %2082 = vdwg.mxu0
    %2083 = vmatpush.bf16.msra.mxu0 %v1109
    %2084 = vmatpush.bf16.msra.mxu0 %v1105
    %2085 = vmatpush.bf16.msra.mxu0 %v1101
    %2086 = vmatpush.bf16.msra.mxu0 %v1097
    %2087 = vmatpush.bf16.msra.mxu0 %v1093
    %2088 = vmatpush.bf16.msra.mxu0 %v1089
    %2089 = vmatpush.bf16.msra.mxu0 %v1085
    %2090 = vmatpush.bf16.msra.mxu0 %v1081
    %2091 = vmatmul.bf16.gmra.mxu0 %v163
    %v2092 = vpop.f32.mrf.mxu0
    %v2093 = vadd.f32 %v2064, %v2092
    %v2094 = vpop.f32.mrf.mxu0
    %v2095 = vadd.f32 %v2066, %v2094
    %2096 = vmatmul.bf16.gmra.mxu0 %v170
    %v2097 = vpop.f32.mrf.mxu0
    %v2098 = vadd.f32 %v2069, %v2097
    %v2099 = vpop.f32.mrf.mxu0
    %v2100 = vadd.f32 %v2071, %v2099
    %2101 = vmatmul.bf16.gmra.mxu0 %v177
    %v2102 = vpop.f32.mrf.mxu0
    %v2103 = vadd.f32 %v2074, %v2102
    %v2104 = vpop.f32.mrf.mxu0
    %v2105 = vadd.f32 %v2076, %v2104
    %2106 = vmatmul.bf16.gmra.mxu0 %v184
    %v2107 = vpop.f32.mrf.mxu0
    %v2108 = vadd.f32 %v2079, %v2107
    %v2109 = vpop.f32.mrf.mxu0
    %v2110 = vadd.f32 %v2081, %v2109
    %2111 = vdwg.mxu0
    %2112 = vmatpush.bf16.msra.mxu0 %v1141
    %2113 = vmatpush.bf16.msra.mxu0 %v1137
    %2114 = vmatpush.bf16.msra.mxu0 %v1133
    %2115 = vmatpush.bf16.msra.mxu0 %v1129
    %2116 = vmatpush.bf16.msra.mxu0 %v1125
    %2117 = vmatpush.bf16.msra.mxu0 %v1121
    %2118 = vmatpush.bf16.msra.mxu0 %v1117
    %2119 = vmatpush.bf16.msra.mxu0 %v1113
    %2120 = vmatmul.bf16.gmra.mxu0 %v164
    %v2121 = vpop.f32.mrf.mxu0
    %v2122 = vadd.f32 %v2093, %v2121
    %v2123 = vpop.f32.mrf.mxu0
    %v2124 = vadd.f32 %v2095, %v2123
    %2125 = vmatmul.bf16.gmra.mxu0 %v171
    %v2126 = vpop.f32.mrf.mxu0
    %v2127 = vadd.f32 %v2098, %v2126
    %v2128 = vpop.f32.mrf.mxu0
    %v2129 = vadd.f32 %v2100, %v2128
    %2130 = vmatmul.bf16.gmra.mxu0 %v178
    %v2131 = vpop.f32.mrf.mxu0
    %v2132 = vadd.f32 %v2103, %v2131
    %v2133 = vpop.f32.mrf.mxu0
    %v2134 = vadd.f32 %v2105, %v2133
    %2135 = vmatmul.bf16.gmra.mxu0 %v185
    %v2136 = vpop.f32.mrf.mxu0
    %v2137 = vadd.f32 %v2108, %v2136
    %v2138 = vpop.f32.mrf.mxu0
    %v2139 = vadd.f32 %v2110, %v2138
    %2140 = vdwg.mxu0
    %2141 = vmatpush.bf16.msra.mxu0 %v1173
    %2142 = vmatpush.bf16.msra.mxu0 %v1169
    %2143 = vmatpush.bf16.msra.mxu0 %v1165
    %2144 = vmatpush.bf16.msra.mxu0 %v1161
    %2145 = vmatpush.bf16.msra.mxu0 %v1157
    %2146 = vmatpush.bf16.msra.mxu0 %v1153
    %2147 = vmatpush.bf16.msra.mxu0 %v1149
    %2148 = vmatpush.bf16.msra.mxu0 %v1145
    %2149 = vmatmul.bf16.gmra.mxu0 %v165
    %v2150 = vpop.f32.mrf.mxu0
    %v2151 = vadd.f32 %v2122, %v2150
    %v2152 = vpop.f32.mrf.mxu0
    %v2153 = vadd.f32 %v2124, %v2152
    %2154 = vmatmul.bf16.gmra.mxu0 %v172
    %v2155 = vpop.f32.mrf.mxu0
    %v2156 = vadd.f32 %v2127, %v2155
    %v2157 = vpop.f32.mrf.mxu0
    %v2158 = vadd.f32 %v2129, %v2157
    %2159 = vmatmul.bf16.gmra.mxu0 %v179
    %v2160 = vpop.f32.mrf.mxu0
    %v2161 = vadd.f32 %v2132, %v2160
    %v2162 = vpop.f32.mrf.mxu0
    %v2163 = vadd.f32 %v2134, %v2162
    %2164 = vmatmul.bf16.gmra.mxu0 %v186
    %v2165 = vpop.f32.mrf.mxu0
    %v2166 = vadd.f32 %v2137, %v2165
    %v2167 = vpop.f32.mrf.mxu0
    %v2168 = vadd.f32 %v2139, %v2167
    %2169 = vdwg.mxu0
    %2170 = vmatpush.bf16.msra.mxu0 0
    %2171 = vmatpush.bf16.msra.mxu0 0
    %2172 = vmatpush.bf16.msra.mxu0 0
    %2173 = vmatpush.bf16.msra.mxu0 0
    %2174 = vmatpush.bf16.msra.mxu0 0
    %2175 = vmatpush.bf16.msra.mxu0 0
    %2176 = vmatpush.bf16.msra.mxu0 0
    %2177 = vmatpush.bf16.msra.mxu0 %v1177
    %2178 = vmatmul.bf16.gmra.mxu0 %v1376
    %v2179 = vpop.f32.mrf.mxu0
    %v2180 = vadd.f32 %v2151, %v2179
    %v2181 = vpop.f32.mrf.mxu0
    %v2182 = vadd.f32 %v2153, %v2181
    %2183 = vmatmul.bf16.gmra.mxu0 %v1379
    %v2184 = vpop.f32.mrf.mxu0
    %v2185 = vadd.f32 %v2156, %v2184
    %v2186 = vpop.f32.mrf.mxu0
    %v2187 = vadd.f32 %v2158, %v2186
    %2188 = vmatmul.bf16.gmra.mxu0 %v1382
    %v2189 = vpop.f32.mrf.mxu0
    %v2190 = vadd.f32 %v2161, %v2189
    %v2191 = vpop.f32.mrf.mxu0
    %v2192 = vadd.f32 %v2163, %v2191
    %2193 = vmatmul.bf16.gmra.mxu0 %v1385
    %v2194 = vpop.f32.mrf.mxu0
    %v2195 = vadd.f32 %v2166, %v2194
    %v2196 = vpop.f32.mrf.mxu0
    %v2197 = vadd.f32 %v2168, %v2196
    %2198 = vdwg.mxu0
    %v2199 = vmul.f32 %v1571, 0.5
    %v2200 = vmul.f32 %v1774, 0.5
    %v2201 = vmul.f32 %v1977, 0.5
    %v2202 = vmul.f32 %v2180, 0.5
    %v2203 = vmul.f32 %v1573, 0.5
    %v2204 = vmul.f32 %v1776, 0.5
    %v2205 = vmul.f32 %v1979, 0.5
    %v2206 = vmul.f32 %v2182, 0.5
    %v2207 = vmul.f32 %v1576, 0.5
    %v2208 = vmul.f32 %v1779, 0.5
    %v2209 = vmul.f32 %v1982, 0.5
    %v2210 = vmul.f32 %v2185, 0.5
    %v2211 = vmul.f32 %v1578, 0.5
    %v2212 = vmul.f32 %v1781, 0.5
    %v2213 = vmul.f32 %v1984, 0.5
    %v2214 = vmul.f32 %v2187, 0.5
    %v2215 = vmul.f32 %v1581, 0.5
    %v2216 = vmul.f32 %v1784, 0.5
    %v2217 = vmul.f32 %v1987, 0.5
    %v2218 = vmul.f32 %v2190, 0.5
    %v2219 = vmul.f32 %v1583, 0.5
    %v2220 = vmul.f32 %v1786, 0.5
    %v2221 = vmul.f32 %v1989, 0.5
    %v2222 = vmul.f32 %v2192, 0.5
    %v2223 = vmul.f32 %v1586, 0.5
    %v2224 = vmul.f32 %v1789, 0.5
    %v2225 = vmul.f32 %v1992, 0.5
    %v2226 = vmul.f32 %v2195, 0.5
    %v2227 = vmul.f32 %v1588, 0.5
    %v2228 = vmul.f32 %v1791, 0.5
    %v2229 = vmul.f32 %v1994, 0.5
    %v2230 = vmul.f32 %v2197, 0.5
    %v2231 = vtanh.pop %v2199
    %v2232 = vtanh.pop %v2200
    %v2233 = vtanh.pop %v2201
    %v2234 = vtanh.pop %v2202
    %v2235 = vtanh.pop %v2203
    %v2236 = vtanh.pop %v2204
    %v2237 = vtanh.pop %v2205
    %v2238 = vtanh.pop %v2206
    %v2239 = vtanh.pop %v2207
    %v2240 = vtanh.pop %v2208
    %v2241 = vtanh.pop %v2209
    %v2242 = vtanh.pop %v2210
    %v2243 = vtanh.pop %v2211
    %v2244 = vtanh.pop %v2212
    %v2245 = vtanh.pop %v2213
    %v2246 = vtanh.pop %v2214
    %v2247 = vtanh.pop %v2215
    %v2248 = vtanh.pop %v2216
    %v2249 = vtanh.pop %v2217
    %v2250 = vtanh.pop %v2218
    %v2251 = vtanh.pop %v2219
    %v2252 = vtanh.pop %v2220
    %v2253 = vtanh.pop %v2221
    %v2254 = vtanh.pop %v2222
    %v2255 = vtanh.pop %v2223
    %v2256 = vtanh.pop %v2224
    %v2257 = vtanh.pop %v2225
    %v2258 = vtanh.pop %v2226
    %v2259 = vtanh.pop %v2227
    %v2260 = vtanh.pop %v2228
    %v2261 = vtanh.pop %v2229
    %v2262 = vtanh.pop %v2230
    %v2263 = vadd.f32 %v2231, 1.0
    %v2264 = vadd.f32 %v2232, 1.0
    %v2265 = vadd.f32 %v2233, 1.0
    %v2266 = vadd.f32 %v2234, 1.0
    %v2267 = vadd.f32 %v2235, 1.0
    %v2268 = vadd.f32 %v2236, 1.0
    %v2269 = vadd.f32 %v2237, 1.0
    %v2270 = vadd.f32 %v2238, 1.0
    %v2271 = vadd.f32 %v2239, 1.0
    %v2272 = vadd.f32 %v2240, 1.0
    %v2273 = vadd.f32 %v2241, 1.0
    %v2274 = vadd.f32 %v2242, 1.0
    %v2275 = vadd.f32 %v2243, 1.0
    %v2276 = vadd.f32 %v2244, 1.0
    %v2277 = vadd.f32 %v2245, 1.0
    %v2278 = vadd.f32 %v2246, 1.0
    %v2279 = vadd.f32 %v2247, 1.0
    %v2280 = vadd.f32 %v2248, 1.0
    %v2281 = vadd.f32 %v2249, 1.0
    %v2282 = vadd.f32 %v2250, 1.0
    %v2283 = vadd.f32 %v2251, 1.0
    %v2284 = vadd.f32 %v2252, 1.0
    %v2285 = vadd.f32 %v2253, 1.0
    %v2286 = vadd.f32 %v2254, 1.0
    %v2287 = vadd.f32 %v2255, 1.0
    %v2288 = vadd.f32 %v2256, 1.0
    %v2289 = vadd.f32 %v2257, 1.0
    %v2290 = vadd.f32 %v2258, 1.0
    %v2291 = vadd.f32 %v2259, 1.0
    %v2292 = vadd.f32 %v2260, 1.0
    %v2293 = vadd.f32 %v2261, 1.0
    %v2294 = vadd.f32 %v2262, 1.0
    %v2295 = vmul.f32 %v2263, 0.5
    %v2296 = vmul.f32 %v2264, 0.5
    %v2297 = vmul.f32 %v2265, 0.5
    %v2298 = vmul.f32 %v2266, 0.5
    %v2299 = vmul.f32 %v2267, 0.5
    %v2300 = vmul.f32 %v2268, 0.5
    %v2301 = vmul.f32 %v2269, 0.5
    %v2302 = vmul.f32 %v2270, 0.5
    %v2303 = vmul.f32 %v2271, 0.5
    %v2304 = vmul.f32 %v2272, 0.5
    %v2305 = vmul.f32 %v2273, 0.5
    %v2306 = vmul.f32 %v2274, 0.5
    %v2307 = vmul.f32 %v2275, 0.5
    %v2308 = vmul.f32 %v2276, 0.5
    %v2309 = vmul.f32 %v2277, 0.5
    %v2310 = vmul.f32 %v2278, 0.5
    %v2311 = vmul.f32 %v2279, 0.5
    %v2312 = vmul.f32 %v2280, 0.5
    %v2313 = vmul.f32 %v2281, 0.5
    %v2314 = vmul.f32 %v2282, 0.5
    %v2315 = vmul.f32 %v2283, 0.5
    %v2316 = vmul.f32 %v2284, 0.5
    %v2317 = vmul.f32 %v2285, 0.5
    %v2318 = vmul.f32 %v2286, 0.5
    %v2319 = vmul.f32 %v2287, 0.5
    %v2320 = vmul.f32 %v2288, 0.5
    %v2321 = vmul.f32 %v2289, 0.5
    %v2322 = vmul.f32 %v2290, 0.5
    %v2323 = vmul.f32 %v2291, 0.5
    %v2324 = vmul.f32 %v2292, 0.5
    %v2325 = vmul.f32 %v2293, 0.5
    %v2326 = vmul.f32 %v2294, 0.5
    %v2327 = vpack.c.bf16 %v2299, %v2295
    %v2328 = vpack.c.bf16 %v2300, %v2296
    %v2329 = vpack.c.bf16 %v2301, %v2297
    %v2330 = vpack.c.bf16 %v2302, %v2298
    %v2331 = vpack.c.bf16 %v2307, %v2303
    %v2332 = vpack.c.bf16 %v2308, %v2304
    %v2333 = vpack.c.bf16 %v2309, %v2305
    %v2334 = vpack.c.bf16 %v2310, %v2306
    %v2335 = vpack.c.bf16 %v2315, %v2311
    %v2336 = vpack.c.bf16 %v2316, %v2312
    %v2337 = vpack.c.bf16 %v2317, %v2313
    %v2338 = vpack.c.bf16 %v2318, %v2314
    %v2339 = vpack.c.bf16 %v2323, %v2319
    %v2340 = vpack.c.bf16 %v2324, %v2320
    %v2341 = vpack.c.bf16 %v2325, %v2321
    %v2342 = vpack.c.bf16 %v2326, %v2322
    %v2343 = vld [vmem:[#allocation8] sm:$0xff]
    %v2344 = vld [vmem:[#allocation8 + $0x8] sm:$0xff]
    %v2345 = vld [vmem:[#allocation8 + $0x10] sm:$0xff]
    %v2346 = vld [vmem:[#allocation8 + $0x18] sm:$0xff]
    %v2347 = vld [vmem:[#allocation8 + $0x20] sm:$0xff]
    %v2348 = vld [vmem:[#allocation8 + $0x28] sm:$0xff]
    %v2349 = vld [vmem:[#allocation8 + $0x30] sm:$0xff]
    %v2350 = vld [vmem:[#allocation8 + $0x38] sm:$0xff]
    %v2351 = vld [vmem:[#allocation8 + $0x40] sm:$0xff]
    %v2352 = vld [vmem:[#allocation8 + $0x48] sm:$0xff]
    %v2353 = vld [vmem:[#allocation8 + $0x50] sm:$0xff]
    %v2354 = vld [vmem:[#allocation8 + $0x58] sm:$0xff]
    %v2355 = vld [vmem:[#allocation8 + $0x60] sm:$0xff]
    %v2356 = vld [vmem:[#allocation8 + $0x68] sm:$0xff]
    %v2357 = vld [vmem:[#allocation8 + $0x70] sm:$0xff]
    %v2358 = vld [vmem:[#allocation8 + $0x78] sm:$0xff]
    %v2359 = vld [vmem:[#allocation8 + $0x80] sm:$0xff]
    %v2360 = vld [vmem:[#allocation8 + $0x88] sm:$0xff]
    %v2361 = vld [vmem:[#allocation8 + $0x90] sm:$0xff]
    %v2362 = vld [vmem:[#allocation8 + $0x98] sm:$0xff]
    %v2363 = vld [vmem:[#allocation8 + $0xa0] sm:$0xff]
    %v2364 = vld [vmem:[#allocation8 + $0xa8] sm:$0xff]
    %v2365 = vld [vmem:[#allocation8 + $0xb0] sm:$0xff]
    %v2366 = vld [vmem:[#allocation8 + $0xb8] sm:$0xff]
    %v2367 = vld [vmem:[#allocation8 + $0xc0] sm:$0xff]
    %v2368 = vld [vmem:[#allocation8 + $0xc8] sm:$0xff]
    %v2369 = vld [vmem:[#allocation8 + $0xd0] sm:$0xff]
    %v2370 = vld [vmem:[#allocation8 + $0xd8] sm:$0xff]
    %v2371 = vld [vmem:[#allocation8 + $0xe0] sm:$0xff]
    %v2372 = vld [vmem:[#allocation8 + $0xe8] sm:$0xff]
    %v2373 = vld [vmem:[#allocation8 + $0xf0] sm:$0xff]
    %v2374 = vld [vmem:[#allocation8 + $0xf8] sm:$0xff]
    %v2375 = vld [vmem:[#allocation8 + $0x100] sm:$0xff]
    %v2376 = vld [vmem:[#allocation8 + $0x108] sm:$0xff]
    %v2377 = vld [vmem:[#allocation8 + $0x110] sm:$0xff]
    %v2378 = vld [vmem:[#allocation8 + $0x118] sm:$0xff]
    %v2379 = vld [vmem:[#allocation8 + $0x120] sm:$0xff]
    %v2380 = vld [vmem:[#allocation8 + $0x128] sm:$0xff]
    %v2381 = vld [vmem:[#allocation8 + $0x130] sm:$0xff]
    %v2382 = vld [vmem:[#allocation8 + $0x138] sm:$0xff]
    %v2383 = vld [vmem:[#allocation8 + $0x140] sm:$0xff]
    %v2384 = vld [vmem:[#allocation8 + $0x148] sm:$0xff]
    %v2385 = vld [vmem:[#allocation8 + $0x150] sm:$0xff]
    %v2386 = vld [vmem:[#allocation8 + $0x158] sm:$0xff]
    %v2387 = vld [vmem:[#allocation8 + $0x160] sm:$0xff]
    %v2388 = vld [vmem:[#allocation8 + $0x168] sm:$0xff]
    %v2389 = vld [vmem:[#allocation8 + $0x170] sm:$0xff]
    %v2390 = vld [vmem:[#allocation8 + $0x178] sm:$0xff]
    %v2391 = vld [vmem:[#allocation8 + $0x180] sm:$0xff]
    %v2392 = vld [vmem:[#allocation8 + $0x188] sm:$0xff]
    %v2393 = vld [vmem:[#allocation8 + $0x190] sm:$0xff]
    %v2394 = vld [vmem:[#allocation8 + $0x198] sm:$0xff]
    %v2395 = vld [vmem:[#allocation8 + $0x1a0] sm:$0xff]
    %v2396 = vld [vmem:[#allocation8 + $0x1a8] sm:$0xff]
    %v2397 = vld [vmem:[#allocation8 + $0x1b0] sm:$0xff]
    %v2398 = vld [vmem:[#allocation8 + $0x1b8] sm:$0xff]
    %v2399 = vld [vmem:[#allocation8 + $0x1c0] sm:$0xff]
    %v2400 = vld [vmem:[#allocation8 + $0x1c8] sm:$0xff]
    %v2401 = vld [vmem:[#allocation8 + $0x1d0] sm:$0xff]
    %v2402 = vld [vmem:[#allocation8 + $0x1d8] sm:$0xff]
    %v2403 = vld [vmem:[#allocation8 + $0x1e0] sm:$0xff]
    %v2404 = vld [vmem:[#allocation8 + $0x1e8] sm:$0xff]
    %v2405 = vld [vmem:[#allocation8 + $0x1f0] sm:$0xff]
    %v2406 = vld [vmem:[#allocation8 + $0x1f8] sm:$0xff]
    %v2407 = vld [vmem:[%s4] sm:$0x3]
    %v2409 = vperm.slane %v2407, 0
    %v2410 = vperm.slane %v2407, 1
    %v2477 = vunpack.c.l.b16 %v2343
    %v2478 = vunpack.c.h.b16 %v2343
    %v2479 = vunpack.c.l.b16 %v2344
    %v2480 = vunpack.c.h.b16 %v2344
    %v2481 = vunpack.c.l.b16 %v2345
    %v2482 = vunpack.c.h.b16 %v2345
    %v2483 = vunpack.c.l.b16 %v2346
    %v2484 = vunpack.c.h.b16 %v2346
    %v2485 = vunpack.c.l.b16 %v2347
    %v2486 = vunpack.c.h.b16 %v2347
    %v2487 = vunpack.c.l.b16 %v2348
    %v2488 = vunpack.c.h.b16 %v2348
    %v2489 = vunpack.c.l.b16 %v2349
    %v2490 = vunpack.c.h.b16 %v2349
    %v2491 = vunpack.c.l.b16 %v2350
    %v2492 = vunpack.c.h.b16 %v2350
    %v2493 = vunpack.c.l.b16 %v2351
    %v2494 = vunpack.c.h.b16 %v2351
    %v2495 = vunpack.c.l.b16 %v2352
    %v2496 = vunpack.c.h.b16 %v2352
    %v2497 = vunpack.c.l.b16 %v2353
    %v2498 = vunpack.c.h.b16 %v2353
    %v2499 = vunpack.c.l.b16 %v2354
    %v2500 = vunpack.c.h.b16 %v2354
    %v2501 = vunpack.c.l.b16 %v2355
    %v2502 = vunpack.c.h.b16 %v2355
    %v2503 = vunpack.c.l.b16 %v2356
    %v2504 = vunpack.c.h.b16 %v2356
    %v2505 = vunpack.c.l.b16 %v2357
    %v2506 = vunpack.c.h.b16 %v2357
    %v2507 = vunpack.c.l.b16 %v2358
    %v2508 = vunpack.c.h.b16 %v2358
    %v2509 = vunpack.c.l.b16 %v2359
    %v2510 = vunpack.c.h.b16 %v2359
    %v2511 = vunpack.c.l.b16 %v2360
    %v2512 = vunpack.c.h.b16 %v2360
    %v2513 = vunpack.c.l.b16 %v2361
    %v2514 = vunpack.c.h.b16 %v2361
    %v2515 = vunpack.c.l.b16 %v2362
    %v2516 = vunpack.c.h.b16 %v2362
    %v2517 = vunpack.c.l.b16 %v2363
    %v2518 = vunpack.c.h.b16 %v2363
    %v2519 = vunpack.c.l.b16 %v2364
    %v2520 = vunpack.c.h.b16 %v2364
    %v2521 = vunpack.c.l.b16 %v2365
    %v2522 = vunpack.c.h.b16 %v2365
    %v2523 = vunpack.c.l.b16 %v2366
    %v2524 = vunpack.c.h.b16 %v2366
    %v2525 = vunpack.c.l.b16 %v2367
    %v2526 = vunpack.c.h.b16 %v2367
    %v2527 = vunpack.c.l.b16 %v2368
    %v2528 = vunpack.c.h.b16 %v2368
    %v2529 = vunpack.c.l.b16 %v2369
    %v2530 = vunpack.c.h.b16 %v2369
    %v2531 = vunpack.c.l.b16 %v2370
    %v2532 = vunpack.c.h.b16 %v2370
    %v2533 = vunpack.c.l.b16 %v2371
    %v2534 = vunpack.c.h.b16 %v2371
    %v2535 = vunpack.c.l.b16 %v2372
    %v2536 = vunpack.c.h.b16 %v2372
    %v2537 = vunpack.c.l.b16 %v2373
    %v2538 = vunpack.c.h.b16 %v2373
    %v2539 = vunpack.c.l.b16 %v2374
    %v2540 = vunpack.c.h.b16 %v2374
    %v2541 = vunpack.c.l.b16 %v2375
    %v2542 = vunpack.c.h.b16 %v2375
    %v2543 = vunpack.c.l.b16 %v2376
    %v2544 = vunpack.c.h.b16 %v2376
    %v2545 = vunpack.c.l.b16 %v2377
    %v2546 = vunpack.c.h.b16 %v2377
    %v2547 = vunpack.c.l.b16 %v2378
    %v2548 = vunpack.c.h.b16 %v2378
    %v2549 = vunpack.c.l.b16 %v2379
    %v2550 = vunpack.c.h.b16 %v2379
    %v2551 = vunpack.c.l.b16 %v2380
    %v2552 = vunpack.c.h.b16 %v2380
    %v2553 = vunpack.c.l.b16 %v2381
    %v2554 = vunpack.c.h.b16 %v2381
    %v2555 = vunpack.c.l.b16 %v2382
    %v2556 = vunpack.c.h.b16 %v2382
    %v2557 = vunpack.c.l.b16 %v2383
    %v2558 = vunpack.c.h.b16 %v2383
    %v2559 = vunpack.c.l.b16 %v2384
    %v2560 = vunpack.c.h.b16 %v2384
    %v2561 = vunpack.c.l.b16 %v2385
    %v2562 = vunpack.c.h.b16 %v2385
    %v2563 = vunpack.c.l.b16 %v2386
    %v2564 = vunpack.c.h.b16 %v2386
    %v2565 = vunpack.c.l.b16 %v2387
    %v2566 = vunpack.c.h.b16 %v2387
    %v2567 = vunpack.c.l.b16 %v2388
    %v2568 = vunpack.c.h.b16 %v2388
    %v2569 = vunpack.c.l.b16 %v2389
    %v2570 = vunpack.c.h.b16 %v2389
    %v2571 = vunpack.c.l.b16 %v2390
    %v2572 = vunpack.c.h.b16 %v2390
    %v2573 = vunpack.c.l.b16 %v2391
    %v2574 = vunpack.c.h.b16 %v2391
    %v2575 = vunpack.c.l.b16 %v2392
    %v2576 = vunpack.c.h.b16 %v2392
    %v2577 = vunpack.c.l.b16 %v2393
    %v2578 = vunpack.c.h.b16 %v2393
    %v2579 = vunpack.c.l.b16 %v2394
    %v2580 = vunpack.c.h.b16 %v2394
    %v2581 = vunpack.c.l.b16 %v2395
    %v2582 = vunpack.c.h.b16 %v2395
    %v2583 = vunpack.c.l.b16 %v2396
    %v2584 = vunpack.c.h.b16 %v2396
    %v2585 = vunpack.c.l.b16 %v2397
    %v2586 = vunpack.c.h.b16 %v2397
    %v2587 = vunpack.c.l.b16 %v2398
    %v2588 = vunpack.c.h.b16 %v2398
    %v2589 = vunpack.c.l.b16 %v2399
    %v2590 = vunpack.c.h.b16 %v2399
    %v2591 = vunpack.c.l.b16 %v2400
    %v2592 = vunpack.c.h.b16 %v2400
    %v2593 = vunpack.c.l.b16 %v2401
    %v2594 = vunpack.c.h.b16 %v2401
    %v2595 = vunpack.c.l.b16 %v2402
    %v2596 = vunpack.c.h.b16 %v2402
    %v2597 = vunpack.c.l.b16 %v2403
    %v2598 = vunpack.c.h.b16 %v2403
    %v2599 = vunpack.c.l.b16 %v2404
    %v2600 = vunpack.c.h.b16 %v2404
    %v2601 = vunpack.c.l.b16 %v2405
    %v2602 = vunpack.c.h.b16 %v2405
    %v2603 = vunpack.c.l.b16 %v2406
    %v2604 = vunpack.c.h.b16 %v2406
    %v2605 = vpack.c.b16 %v2479, %v2477
    %v2606 = vpack.c.b16 %v2480, %v2478
    %v2607 = vpack.c.b16 %v2483, %v2481
    %v2608 = vpack.c.b16 %v2484, %v2482
    %v2609 = vpack.c.b16 %v2487, %v2485
    %v2610 = vpack.c.b16 %v2488, %v2486
    %v2611 = vpack.c.b16 %v2491, %v2489
    %v2612 = vpack.c.b16 %v2492, %v2490
    %v2613 = vpack.c.b16 %v2495, %v2493
    %v2614 = vpack.c.b16 %v2496, %v2494
    %v2615 = vpack.c.b16 %v2499, %v2497
    %v2616 = vpack.c.b16 %v2500, %v2498
    %v2617 = vpack.c.b16 %v2503, %v2501
    %v2618 = vpack.c.b16 %v2504, %v2502
    %v2619 = vpack.c.b16 %v2507, %v2505
    %v2620 = vpack.c.b16 %v2508, %v2506
    %v2621 = vpack.c.b16 %v2511, %v2509
    %v2622 = vpack.c.b16 %v2512, %v2510
    %v2623 = vpack.c.b16 %v2515, %v2513
    %v2624 = vpack.c.b16 %v2516, %v2514
    %v2625 = vpack.c.b16 %v2519, %v2517
    %v2626 = vpack.c.b16 %v2520, %v2518
    %v2627 = vpack.c.b16 %v2523, %v2521
    %v2628 = vpack.c.b16 %v2524, %v2522
    %v2629 = vpack.c.b16 %v2527, %v2525
    %v2630 = vpack.c.b16 %v2528, %v2526
    %v2631 = vpack.c.b16 %v2531, %v2529
    %v2632 = vpack.c.b16 %v2532, %v2530
    %v2633 = vpack.c.b16 %v2535, %v2533
    %v2634 = vpack.c.b16 %v2536, %v2534
    %v2635 = vpack.c.b16 %v2539, %v2537
    %v2636 = vpack.c.b16 %v2540, %v2538
    %v2637 = vpack.c.b16 %v2543, %v2541
    %v2638 = vpack.c.b16 %v2544, %v2542
    %v2639 = vpack.c.b16 %v2547, %v2545
    %v2640 = vpack.c.b16 %v2548, %v2546
    %v2641 = vpack.c.b16 %v2551, %v2549
    %v2642 = vpack.c.b16 %v2552, %v2550
    %v2643 = vpack.c.b16 %v2555, %v2553
    %v2644 = vpack.c.b16 %v2556, %v2554
    %v2645 = vpack.c.b16 %v2559, %v2557
    %v2646 = vpack.c.b16 %v2560, %v2558
    %v2647 = vpack.c.b16 %v2563, %v2561
    %v2648 = vpack.c.b16 %v2564, %v2562
    %v2649 = vpack.c.b16 %v2567, %v2565
    %v2650 = vpack.c.b16 %v2568, %v2566
    %v2651 = vpack.c.b16 %v2571, %v2569
    %v2652 = vpack.c.b16 %v2572, %v2570
    %v2653 = vpack.c.b16 %v2575, %v2573
    %v2654 = vpack.c.b16 %v2576, %v2574
    %v2655 = vpack.c.b16 %v2579, %v2577
    %v2656 = vpack.c.b16 %v2580, %v2578
    %v2657 = vpack.c.b16 %v2583, %v2581
    %v2658 = vpack.c.b16 %v2584, %v2582
    %v2659 = vpack.c.b16 %v2587, %v2585
    %v2660 = vpack.c.b16 %v2588, %v2586
    %v2661 = vpack.c.b16 %v2591, %v2589
    %v2662 = vpack.c.b16 %v2592, %v2590
    %v2663 = vpack.c.b16 %v2595, %v2593
    %v2664 = vpack.c.b16 %v2596, %v2594
    %v2665 = vpack.c.b16 %v2599, %v2597
    %v2666 = vpack.c.b16 %v2600, %v2598
    %v2667 = vpack.c.b16 %v2603, %v2601
    %v2668 = vpack.c.b16 %v2604, %v2602
    %2733 = vmatpush.bf16.msra.mxu0 %v2619
    %2734 = vmatpush.bf16.msra.mxu0 %v2617
    %2735 = vmatpush.bf16.msra.mxu0 %v2615
    %2736 = vmatpush.bf16.msra.mxu0 %v2613
    %2737 = vmatpush.bf16.msra.mxu0 %v2611
    %2738 = vmatpush.bf16.msra.mxu0 %v2609
    %2739 = vmatpush.bf16.msra.mxu0 %v2607
    %2740 = vmatpush.bf16.msra.mxu0 %v2605
    %2741 = vmatmul.bf16.gmra.mxu0 %v2327
    %v2742 = vpop.f32.mrf.mxu0
    %v2743 = vadd.f32 %v2409, %v2742
    %v2744 = vpop.f32.mrf.mxu0
    %v2745 = vadd.f32 %v2409, %v2744
    %2746 = vmatmul.bf16.gmra.mxu0 %v2331
    %v2747 = vpop.f32.mrf.mxu0
    %v2748 = vadd.f32 %v2409, %v2747
    %v2749 = vpop.f32.mrf.mxu0
    %v2750 = vadd.f32 %v2409, %v2749
    %2751 = vmatmul.bf16.gmra.mxu0 %v2335
    %v2752 = vpop.f32.mrf.mxu0
    %v2753 = vadd.f32 %v2409, %v2752
    %v2754 = vpop.f32.mrf.mxu0
    %v2755 = vadd.f32 %v2409, %v2754
    %2756 = vmatmul.bf16.gmra.mxu0 %v2339
    %v2757 = vpop.f32.mrf.mxu0
    %v2758 = vadd.f32 %v2409, %v2757
    %v2759 = vpop.f32.mrf.mxu0
    %v2760 = vadd.f32 %v2409, %v2759
    %2761 = vdwg.mxu0
    %2762 = vmatpush.bf16.msra.mxu0 %v2635
    %2763 = vmatpush.bf16.msra.mxu0 %v2633
    %2764 = vmatpush.bf16.msra.mxu0 %v2631
    %2765 = vmatpush.bf16.msra.mxu0 %v2629
    %2766 = vmatpush.bf16.msra.mxu0 %v2627
    %2767 = vmatpush.bf16.msra.mxu0 %v2625
    %2768 = vmatpush.bf16.msra.mxu0 %v2623
    %2769 = vmatpush.bf16.msra.mxu0 %v2621
    %2770 = vmatmul.bf16.gmra.mxu0 %v2328
    %v2771 = vpop.f32.mrf.mxu0
    %v2772 = vadd.f32 %v2743, %v2771
    %v2773 = vpop.f32.mrf.mxu0
    %v2774 = vadd.f32 %v2745, %v2773
    %2775 = vmatmul.bf16.gmra.mxu0 %v2332
    %v2776 = vpop.f32.mrf.mxu0
    %v2777 = vadd.f32 %v2748, %v2776
    %v2778 = vpop.f32.mrf.mxu0
    %v2779 = vadd.f32 %v2750, %v2778
    %2780 = vmatmul.bf16.gmra.mxu0 %v2336
    %v2781 = vpop.f32.mrf.mxu0
    %v2782 = vadd.f32 %v2753, %v2781
    %v2783 = vpop.f32.mrf.mxu0
    %v2784 = vadd.f32 %v2755, %v2783
    %2785 = vmatmul.bf16.gmra.mxu0 %v2340
    %v2786 = vpop.f32.mrf.mxu0
    %v2787 = vadd.f32 %v2758, %v2786
    %v2788 = vpop.f32.mrf.mxu0
    %v2789 = vadd.f32 %v2760, %v2788
    %2790 = vdwg.mxu0
    %2791 = vmatpush.bf16.msra.mxu0 %v2651
    %2792 = vmatpush.bf16.msra.mxu0 %v2649
    %2793 = vmatpush.bf16.msra.mxu0 %v2647
    %2794 = vmatpush.bf16.msra.mxu0 %v2645
    %2795 = vmatpush.bf16.msra.mxu0 %v2643
    %2796 = vmatpush.bf16.msra.mxu0 %v2641
    %2797 = vmatpush.bf16.msra.mxu0 %v2639
    %2798 = vmatpush.bf16.msra.mxu0 %v2637
    %2799 = vmatmul.bf16.gmra.mxu0 %v2329
    %v2800 = vpop.f32.mrf.mxu0
    %v2801 = vadd.f32 %v2772, %v2800
    %v2802 = vpop.f32.mrf.mxu0
    %v2803 = vadd.f32 %v2774, %v2802
    %2804 = vmatmul.bf16.gmra.mxu0 %v2333
    %v2805 = vpop.f32.mrf.mxu0
    %v2806 = vadd.f32 %v2777, %v2805
    %v2807 = vpop.f32.mrf.mxu0
    %v2808 = vadd.f32 %v2779, %v2807
    %2809 = vmatmul.bf16.gmra.mxu0 %v2337
    %v2810 = vpop.f32.mrf.mxu0
    %v2811 = vadd.f32 %v2782, %v2810
    %v2812 = vpop.f32.mrf.mxu0
    %v2813 = vadd.f32 %v2784, %v2812
    %2814 = vmatmul.bf16.gmra.mxu0 %v2341
    %v2815 = vpop.f32.mrf.mxu0
    %v2816 = vadd.f32 %v2787, %v2815
    %v2817 = vpop.f32.mrf.mxu0
    %v2818 = vadd.f32 %v2789, %v2817
    %2819 = vdwg.mxu0
    %2820 = vmatpush.bf16.msra.mxu0 %v2667
    %2821 = vmatpush.bf16.msra.mxu0 %v2665
    %2822 = vmatpush.bf16.msra.mxu0 %v2663
    %2823 = vmatpush.bf16.msra.mxu0 %v2661
    %2824 = vmatpush.bf16.msra.mxu0 %v2659
    %2825 = vmatpush.bf16.msra.mxu0 %v2657
    %2826 = vmatpush.bf16.msra.mxu0 %v2655
    %2827 = vmatpush.bf16.msra.mxu0 %v2653
    %2828 = vmatmul.bf16.gmra.mxu0 %v2330
    %v2829 = vpop.f32.mrf.mxu0
    %v2830 = vadd.f32 %v2801, %v2829
    %v2831 = vpop.f32.mrf.mxu0
    %v2832 = vadd.f32 %v2803, %v2831
    %2833 = vmatmul.bf16.gmra.mxu0 %v2334
    %v2834 = vpop.f32.mrf.mxu0
    %v2835 = vadd.f32 %v2806, %v2834
    %v2836 = vpop.f32.mrf.mxu0
    %v2837 = vadd.f32 %v2808, %v2836
    %2838 = vmatmul.bf16.gmra.mxu0 %v2338
    %v2839 = vpop.f32.mrf.mxu0
    %v2840 = vadd.f32 %v2811, %v2839
    %v2841 = vpop.f32.mrf.mxu0
    %v2842 = vadd.f32 %v2813, %v2841
    %2843 = vmatmul.bf16.gmra.mxu0 %v2342
    %v2844 = vpop.f32.mrf.mxu0
    %v2845 = vadd.f32 %v2816, %v2844
    %v2846 = vpop.f32.mrf.mxu0
    %v2847 = vadd.f32 %v2818, %v2846
    %2848 = vdwg.mxu0
    %2849 = vmatpush.bf16.msra.mxu0 %v2620
    %2850 = vmatpush.bf16.msra.mxu0 %v2618
    %2851 = vmatpush.bf16.msra.mxu0 %v2616
    %2852 = vmatpush.bf16.msra.mxu0 %v2614
    %2853 = vmatpush.bf16.msra.mxu0 %v2612
    %2854 = vmatpush.bf16.msra.mxu0 %v2610
    %2855 = vmatpush.bf16.msra.mxu0 %v2608
    %2856 = vmatpush.bf16.msra.mxu0 %v2606
    %2857 = vmatmul.bf16.gmra.mxu0 %v2327
    %v2858 = vpop.f32.mrf.mxu0
    %v2859 = vadd.f32 %v2410, %v2858
    %v2860 = vpop.f32.mrf.mxu0
    %v2861 = vadd.f32 %v2410, %v2860
    %2862 = vmatmul.bf16.gmra.mxu0 %v2331
    %v2863 = vpop.f32.mrf.mxu0
    %v2864 = vadd.f32 %v2410, %v2863
    %v2865 = vpop.f32.mrf.mxu0
    %v2866 = vadd.f32 %v2410, %v2865
    %2867 = vmatmul.bf16.gmra.mxu0 %v2335
    %v2868 = vpop.f32.mrf.mxu0
    %v2869 = vadd.f32 %v2410, %v2868
    %v2870 = vpop.f32.mrf.mxu0
    %v2871 = vadd.f32 %v2410, %v2870
    %2872 = vmatmul.bf16.gmra.mxu0 %v2339
    %v2873 = vpop.f32.mrf.mxu0
    %v2874 = vadd.f32 %v2410, %v2873
    %v2875 = vpop.f32.mrf.mxu0
    %v2876 = vadd.f32 %v2410, %v2875
    %2877 = vdwg.mxu0
    %2878 = vmatpush.bf16.msra.mxu0 %v2636
    %2879 = vmatpush.bf16.msra.mxu0 %v2634
    %2880 = vmatpush.bf16.msra.mxu0 %v2632
    %2881 = vmatpush.bf16.msra.mxu0 %v2630
    %2882 = vmatpush.bf16.msra.mxu0 %v2628
    %2883 = vmatpush.bf16.msra.mxu0 %v2626
    %2884 = vmatpush.bf16.msra.mxu0 %v2624
    %2885 = vmatpush.bf16.msra.mxu0 %v2622
    %2886 = vmatmul.bf16.gmra.mxu0 %v2328
    %v2887 = vpop.f32.mrf.mxu0
    %v2888 = vadd.f32 %v2859, %v2887
    %v2889 = vpop.f32.mrf.mxu0
    %v2890 = vadd.f32 %v2861, %v2889
    %2891 = vmatmul.bf16.gmra.mxu0 %v2332
    %v2892 = vpop.f32.mrf.mxu0
    %v2893 = vadd.f32 %v2864, %v2892
    %v2894 = vpop.f32.mrf.mxu0
    %v2895 = vadd.f32 %v2866, %v2894
    %2896 = vmatmul.bf16.gmra.mxu0 %v2336
    %v2897 = vpop.f32.mrf.mxu0
    %v2898 = vadd.f32 %v2869, %v2897
    %v2899 = vpop.f32.mrf.mxu0
    %v2900 = vadd.f32 %v2871, %v2899
    %2901 = vmatmul.bf16.gmra.mxu0 %v2340
    %v2902 = vpop.f32.mrf.mxu0
    %v2903 = vadd.f32 %v2874, %v2902
    %v2904 = vpop.f32.mrf.mxu0
    %v2905 = vadd.f32 %v2876, %v2904
    %2906 = vdwg.mxu0
    %2907 = vmatpush.bf16.msra.mxu0 %v2652
    %2908 = vmatpush.bf16.msra.mxu0 %v2650
    %2909 = vmatpush.bf16.msra.mxu0 %v2648
    %2910 = vmatpush.bf16.msra.mxu0 %v2646
    %2911 = vmatpush.bf16.msra.mxu0 %v2644
    %2912 = vmatpush.bf16.msra.mxu0 %v2642
    %2913 = vmatpush.bf16.msra.mxu0 %v2640
    %2914 = vmatpush.bf16.msra.mxu0 %v2638
    %2915 = vmatmul.bf16.gmra.mxu0 %v2329
    %v2916 = vpop.f32.mrf.mxu0
    %v2917 = vadd.f32 %v2888, %v2916
    %v2918 = vpop.f32.mrf.mxu0
    %v2919 = vadd.f32 %v2890, %v2918
    %2920 = vmatmul.bf16.gmra.mxu0 %v2333
    %v2921 = vpop.f32.mrf.mxu0
    %v2922 = vadd.f32 %v2893, %v2921
    %v2923 = vpop.f32.mrf.mxu0
    %v2924 = vadd.f32 %v2895, %v2923
    %2925 = vmatmul.bf16.gmra.mxu0 %v2337
    %v2926 = vpop.f32.mrf.mxu0
    %v2927 = vadd.f32 %v2898, %v2926
    %v2928 = vpop.f32.mrf.mxu0
    %v2929 = vadd.f32 %v2900, %v2928
    %2930 = vmatmul.bf16.gmra.mxu0 %v2341
    %v2931 = vpop.f32.mrf.mxu0
    %v2932 = vadd.f32 %v2903, %v2931
    %v2933 = vpop.f32.mrf.mxu0
    %v2934 = vadd.f32 %v2905, %v2933
    %2935 = vdwg.mxu0
    %2936 = vmatpush.bf16.msra.mxu0 %v2668
    %2937 = vmatpush.bf16.msra.mxu0 %v2666
    %2938 = vmatpush.bf16.msra.mxu0 %v2664
    %2939 = vmatpush.bf16.msra.mxu0 %v2662
    %2940 = vmatpush.bf16.msra.mxu0 %v2660
    %2941 = vmatpush.bf16.msra.mxu0 %v2658
    %2942 = vmatpush.bf16.msra.mxu0 %v2656
    %2943 = vmatpush.bf16.msra.mxu0 %v2654
    %2944 = vmatmul.bf16.gmra.mxu0 %v2330
    %v2945 = vpop.f32.mrf.mxu0
    %v2946 = vadd.f32 %v2917, %v2945
    %v2947 = vpop.f32.mrf.mxu0
    %v2948 = vadd.f32 %v2919, %v2947
    %2949 = vmatmul.bf16.gmra.mxu0 %v2334
    %v2950 = vpop.f32.mrf.mxu0
    %v2951 = vadd.f32 %v2922, %v2950
    %v2952 = vpop.f32.mrf.mxu0
    %v2953 = vadd.f32 %v2924, %v2952
    %2954 = vmatmul.bf16.gmra.mxu0 %v2338
    %v2955 = vpop.f32.mrf.mxu0
    %v2956 = vadd.f32 %v2927, %v2955
    %v2957 = vpop.f32.mrf.mxu0
    %v2958 = vadd.f32 %v2929, %v2957
    %2959 = vmatmul.bf16.gmra.mxu0 %v2342
    %v2960 = vpop.f32.mrf.mxu0
    %v2961 = vadd.f32 %v2932, %v2960
    %v2962 = vpop.f32.mrf.mxu0
    %v2963 = vadd.f32 %v2934, %v2962
    %2964 = vdwg.mxu0
    %v2965 = vmul.f32 %v2830, 0.5
    %v2966 = vmul.f32 %v2946, 0.5
    %v2967 = vmul.f32 %v2832, 0.5
    %v2968 = vmul.f32 %v2948, 0.5
    %v2969 = vmul.f32 %v2835, 0.5
    %v2970 = vmul.f32 %v2951, 0.5
    %v2971 = vmul.f32 %v2837, 0.5
    %v2972 = vmul.f32 %v2953, 0.5
    %v2973 = vmul.f32 %v2840, 0.5
    %v2974 = vmul.f32 %v2956, 0.5
    %v2975 = vmul.f32 %v2842, 0.5
    %v2976 = vmul.f32 %v2958, 0.5
    %v2977 = vmul.f32 %v2845, 0.5
    %v2978 = vmul.f32 %v2961, 0.5
    %v2979 = vmul.f32 %v2847, 0.5
    %v2980 = vmul.f32 %v2963, 0.5
    %v2981 = vtanh.pop %v2965
    %v2982 = vtanh.pop %v2966
    %v2983 = vtanh.pop %v2967
    %v2984 = vtanh.pop %v2968
    %v2985 = vtanh.pop %v2969
    %v2986 = vtanh.pop %v2970
    %v2987 = vtanh.pop %v2971
    %v2988 = vtanh.pop %v2972
    %v2989 = vtanh.pop %v2973
    %v2990 = vtanh.pop %v2974
    %v2991 = vtanh.pop %v2975
    %v2992 = vtanh.pop %v2976
    %v2993 = vtanh.pop %v2977
    %v2994 = vtanh.pop %v2978
    %v2995 = vtanh.pop %v2979
    %v2996 = vtanh.pop %v2980
    %v2997 = vadd.f32 %v2981, 1.0
    %v2998 = vadd.f32 %v2982, 1.0
    %v2999 = vadd.f32 %v2983, 1.0
    %v3000 = vadd.f32 %v2984, 1.0
    %v3001 = vadd.f32 %v2985, 1.0
    %v3002 = vadd.f32 %v2986, 1.0
    %v3003 = vadd.f32 %v2987, 1.0
    %v3004 = vadd.f32 %v2988, 1.0
    %v3005 = vadd.f32 %v2989, 1.0
    %v3006 = vadd.f32 %v2990, 1.0
    %v3007 = vadd.f32 %v2991, 1.0
    %v3008 = vadd.f32 %v2992, 1.0
    %v3009 = vadd.f32 %v2993, 1.0
    %v3010 = vadd.f32 %v2994, 1.0
    %v3011 = vadd.f32 %v2995, 1.0
    %v3012 = vadd.f32 %v2996, 1.0
    %v3013 = vmul.f32 %v2997, 0.5
    %v3014 = vmul.f32 %v2998, 0.5
    %v3015 = vmul.f32 %v2999, 0.5
    %v3016 = vmul.f32 %v3000, 0.5
    %v3017 = vmul.f32 %v3001, 0.5
    %v3018 = vmul.f32 %v3002, 0.5
    %v3019 = vmul.f32 %v3003, 0.5
    %v3020 = vmul.f32 %v3004, 0.5
    %v3021 = vmul.f32 %v3005, 0.5
    %v3022 = vmul.f32 %v3006, 0.5
    %v3023 = vmul.f32 %v3007, 0.5
    %v3024 = vmul.f32 %v3008, 0.5
    %v3025 = vmul.f32 %v3009, 0.5
    %v3026 = vmul.f32 %v3010, 0.5
    %v3027 = vmul.f32 %v3011, 0.5
    %v3028 = vmul.f32 %v3012, 0.5
    %v3029 = vpack.c.bf16 %v3015, %v3013
    %v3030 = vpack.c.bf16 %v3016, %v3014
    %v3031 = vpack.c.bf16 %v3019, %v3017
    %v3032 = vpack.c.bf16 %v3020, %v3018
    %v3033 = vpack.c.bf16 %v3023, %v3021
    %v3034 = vpack.c.bf16 %v3024, %v3022
    %v3035 = vpack.c.bf16 %v3027, %v3025
    %v3036 = vpack.c.bf16 %v3028, %v3026
    %v3037 = vld [vmem:[#allocation10] sm:$0xf]
    %v3038 = vld [vmem:[#allocation10 + $0x4] sm:$0xf]
    %v3039 = vld [vmem:[#allocation10 + $0x8] sm:$0xf]
    %v3040 = vld [vmem:[#allocation10 + $0xc] sm:$0xf]
    %v3041 = vld [vmem:[#allocation10 + $0x10] sm:$0xf]
    %v3042 = vld [vmem:[#allocation10 + $0x14] sm:$0xf]
    %v3043 = vld [vmem:[#allocation10 + $0x18] sm:$0xf]
    %v3044 = vld [vmem:[#allocation10 + $0x1c] sm:$0xf]
    %v3045 = vld [vmem:[#allocation10 + $0x20] sm:$0xf]
    %v3046 = vld [vmem:[#allocation10 + $0x24] sm:$0xf]
    %v3047 = vld [vmem:[#allocation10 + $0x28] sm:$0xf]
    %v3048 = vld [vmem:[#allocation10 + $0x2c] sm:$0xf]
    %v3049 = vld [vmem:[#allocation10 + $0x30] sm:$0xf]
    %v3050 = vld [vmem:[#allocation10 + $0x34] sm:$0xf]
    %v3051 = vld [vmem:[#allocation10 + $0x38] sm:$0xf]
    %v3052 = vld [vmem:[#allocation10 + $0x3c] sm:$0xf]
    %v3053 = vld [vmem:[#allocation10 + $0x40] sm:$0xf]
    %v3054 = vld [vmem:[#allocation10 + $0x44] sm:$0xf]
    %v3055 = vld [vmem:[#allocation10 + $0x48] sm:$0xf]
    %v3056 = vld [vmem:[#allocation10 + $0x4c] sm:$0xf]
    %v3057 = vld [vmem:[#allocation10 + $0x50] sm:$0xf]
    %v3058 = vld [vmem:[#allocation10 + $0x54] sm:$0xf]
    %v3059 = vld [vmem:[#allocation10 + $0x58] sm:$0xf]
    %v3060 = vld [vmem:[#allocation10 + $0x5c] sm:$0xf]
    %v3061 = vld [vmem:[#allocation10 + $0x60] sm:$0xf]
    %v3062 = vld [vmem:[#allocation10 + $0x64] sm:$0xf]
    %v3063 = vld [vmem:[#allocation10 + $0x68] sm:$0xf]
    %v3064 = vld [vmem:[#allocation10 + $0x6c] sm:$0xf]
    %v3065 = vld [vmem:[#allocation10 + $0x70] sm:$0xf]
    %v3066 = vld [vmem:[#allocation10 + $0x74] sm:$0xf]
    %v3067 = vld [vmem:[#allocation10 + $0x78] sm:$0xf]
    %v3068 = vld [vmem:[#allocation10 + $0x7c] sm:$0xf]
    %v3069 = vld [vmem:[%s6] sm:$0x1]
    %v3071 = vperm.slane %v3069, 0
    %v3105 = vunpack.c.l.b16 %v3037
    %v3106 = vunpack.c.l.b16 %v3038
    %v3107 = vunpack.c.l.b16 %v3039
    %v3108 = vunpack.c.l.b16 %v3040
    %v3109 = vunpack.c.l.b16 %v3041
    %v3110 = vunpack.c.l.b16 %v3042
    %v3111 = vunpack.c.l.b16 %v3043
    %v3112 = vunpack.c.l.b16 %v3044
    %v3113 = vunpack.c.l.b16 %v3045
    %v3114 = vunpack.c.l.b16 %v3046
    %v3115 = vunpack.c.l.b16 %v3047
    %v3116 = vunpack.c.l.b16 %v3048
    %v3117 = vunpack.c.l.b16 %v3049
    %v3118 = vunpack.c.l.b16 %v3050
    %v3119 = vunpack.c.l.b16 %v3051
    %v3120 = vunpack.c.l.b16 %v3052
    %v3121 = vunpack.c.l.b16 %v3053
    %v3122 = vunpack.c.l.b16 %v3054
    %v3123 = vunpack.c.l.b16 %v3055
    %v3124 = vunpack.c.l.b16 %v3056
    %v3125 = vunpack.c.l.b16 %v3057
    %v3126 = vunpack.c.l.b16 %v3058
    %v3127 = vunpack.c.l.b16 %v3059
    %v3128 = vunpack.c.l.b16 %v3060
    %v3129 = vunpack.c.l.b16 %v3061
    %v3130 = vunpack.c.l.b16 %v3062
    %v3131 = vunpack.c.l.b16 %v3063
    %v3132 = vunpack.c.l.b16 %v3064
    %v3133 = vunpack.c.l.b16 %v3065
    %v3134 = vunpack.c.l.b16 %v3066
    %v3135 = vunpack.c.l.b16 %v3067
    %v3136 = vunpack.c.l.b16 %v3068
    %v3137 = vpack.c.b16 %v3106, %v3105
    %v3138 = vpack.c.b16 %v3108, %v3107
    %v3139 = vpack.c.b16 %v3110, %v3109
    %v3140 = vpack.c.b16 %v3112, %v3111
    %v3141 = vpack.c.b16 %v3114, %v3113
    %v3142 = vpack.c.b16 %v3116, %v3115
    %v3143 = vpack.c.b16 %v3118, %v3117
    %v3144 = vpack.c.b16 %v3120, %v3119
    %v3145 = vpack.c.b16 %v3122, %v3121
    %v3146 = vpack.c.b16 %v3124, %v3123
    %v3147 = vpack.c.b16 %v3126, %v3125
    %v3148 = vpack.c.b16 %v3128, %v3127
    %v3149 = vpack.c.b16 %v3130, %v3129
    %v3150 = vpack.c.b16 %v3132, %v3131
    %v3151 = vpack.c.b16 %v3134, %v3133
    %v3152 = vpack.c.b16 %v3136, %v3135
    %3169 = vmatpush.bf16.msra.mxu0 %v3144
    %3170 = vmatpush.bf16.msra.mxu0 %v3143
    %3171 = vmatpush.bf16.msra.mxu0 %v3142
    %3172 = vmatpush.bf16.msra.mxu0 %v3141
    %3173 = vmatpush.bf16.msra.mxu0 %v3140
    %3174 = vmatpush.bf16.msra.mxu0 %v3139
    %3175 = vmatpush.bf16.msra.mxu0 %v3138
    %3176 = vmatpush.bf16.msra.mxu0 %v3137
    %3177 = vmatmul.bf16.gmra.mxu0 %v3029
    %v3178 = vpop.f32.mrf.mxu0
    %v3179 = vadd.f32 %v3071, %v3178
    %v3180 = vpop.f32.mrf.mxu0
    %v3181 = vadd.f32 %v3071, %v3180
    %3182 = vmatmul.bf16.gmra.mxu0 %v3031
    %v3183 = vpop.f32.mrf.mxu0
    %v3184 = vadd.f32 %v3071, %v3183
    %v3185 = vpop.f32.mrf.mxu0
    %v3186 = vadd.f32 %v3071, %v3185
    %3187 = vmatmul.bf16.gmra.mxu0 %v3033
    %v3188 = vpop.f32.mrf.mxu0
    %v3189 = vadd.f32 %v3071, %v3188
    %v3190 = vpop.f32.mrf.mxu0
    %v3191 = vadd.f32 %v3071, %v3190
    %3192 = vmatmul.bf16.gmra.mxu0 %v3035
    %v3193 = vpop.f32.mrf.mxu0
    %v3194 = vadd.f32 %v3071, %v3193
    %v3195 = vpop.f32.mrf.mxu0
    %v3196 = vadd.f32 %v3071, %v3195
    %3197 = vdwg.mxu0
    %3198 = vmatpush.bf16.msra.mxu0 %v3152
    %3199 = vmatpush.bf16.msra.mxu0 %v3151
    %3200 = vmatpush.bf16.msra.mxu0 %v3150
    %3201 = vmatpush.bf16.msra.mxu0 %v3149
    %3202 = vmatpush.bf16.msra.mxu0 %v3148
    %3203 = vmatpush.bf16.msra.mxu0 %v3147
    %3204 = vmatpush.bf16.msra.mxu0 %v3146
    %3205 = vmatpush.bf16.msra.mxu0 %v3145
    %3206 = vmatmul.bf16.gmra.mxu0 %v3030
    %v3207 = vpop.f32.mrf.mxu0
    %v3208 = vadd.f32 %v3179, %v3207
    %v3209 = vpop.f32.mrf.mxu0
    %v3210 = vadd.f32 %v3181, %v3209
    %3211 = vmatmul.bf16.gmra.mxu0 %v3032
    %v3212 = vpop.f32.mrf.mxu0
    %v3213 = vadd.f32 %v3184, %v3212
    %v3214 = vpop.f32.mrf.mxu0
    %v3215 = vadd.f32 %v3186, %v3214
    %3216 = vmatmul.bf16.gmra.mxu0 %v3034
    %v3217 = vpop.f32.mrf.mxu0
    %v3218 = vadd.f32 %v3189, %v3217
    %v3219 = vpop.f32.mrf.mxu0
    %v3220 = vadd.f32 %v3191, %v3219
    %3221 = vmatmul.bf16.gmra.mxu0 %v3036
    %v3222 = vpop.f32.mrf.mxu0
    %v3223 = vadd.f32 %v3194, %v3222
    %v3224 = vpop.f32.mrf.mxu0
    %v3225 = vadd.f32 %v3196, %v3224
    %3226 = vdwg.mxu0
    %v3227 = vmul.f32 %v3208, 0.5
    %v3228 = vmul.f32 %v3210, 0.5
    %v3229 = vmul.f32 %v3213, 0.5
    %v3230 = vmul.f32 %v3215, 0.5
    %v3231 = vmul.f32 %v3218, 0.5
    %v3232 = vmul.f32 %v3220, 0.5
    %v3233 = vmul.f32 %v3223, 0.5
    %v3234 = vmul.f32 %v3225, 0.5
    %v3235 = vtanh.pop %v3227
    %v3236 = vtanh.pop %v3228
    %v3237 = vtanh.pop %v3229
    %v3238 = vtanh.pop %v3230
    %v3239 = vtanh.pop %v3231
    %v3240 = vtanh.pop %v3232
    %v3241 = vtanh.pop %v3233
    %v3242 = vtanh.pop %v3234
    %v3243 = vadd.f32 %v3235, 1.0
    %v3244 = vadd.f32 %v3236, 1.0
    %v3245 = vadd.f32 %v3237, 1.0
    %v3246 = vadd.f32 %v3238, 1.0
    %v3247 = vadd.f32 %v3239, 1.0
    %v3248 = vadd.f32 %v3240, 1.0
    %v3249 = vadd.f32 %v3241, 1.0
    %v3250 = vadd.f32 %v3242, 1.0
    %v3251 = vmul.f32 %v3243, 0.5
    %v3252 = vmul.f32 %v3244, 0.5
    %v3253 = vmul.f32 %v3245, 0.5
    %v3254 = vmul.f32 %v3246, 0.5
    %v3255 = vmul.f32 %v3247, 0.5
    %v3256 = vmul.f32 %v3248, 0.5
    %v3257 = vmul.f32 %v3249, 0.5
    %v3258 = vmul.f32 %v3250, 0.5
    %3259 = vst [vmem:[#allocation11] sm:$0xff] %v3251
    %3260 = vst [vmem:[#allocation11 + $0x8] sm:$0xff] %v3252
    %3261 = vst [vmem:[#allocation11 + $0x10] sm:$0xff] %v3253
    %3262 = vst [vmem:[#allocation11 + $0x18] sm:$0xff] %v3254
    %3263 = vst [vmem:[#allocation11 + $0x20] sm:$0xff] %v3255
    %3264 = vst [vmem:[#allocation11 + $0x28] sm:$0xff] %v3256
    %3265 = vst [vmem:[#allocation11 + $0x30] sm:$0xff] %v3257
    %3266 = vst [vmem:[#allocation11 + $0x38] sm:$0xff] %v3258
    // Predicated region
    $region50: #{tpu_custom_call.1} parent=1 // pred_check
      _
    $region51: #{tpu_custom_call.1} parent=1 // pred_check_branch
      %3268 = sbr.rel (0) target = $region53
    $region52: #{tpu_custom_call.1} parent=1 // pred_region
      %3270 = vsyncadd [#allocation4], 0
      %s3271 = sshll.u32 [#allocation11], 4
      %s3272 = int_to_ptr.vmem [resolvable:$true] %s3271
      %s3273 = sshll.u32 %s7, 4
      %s3274 = int_to_ptr.hbm [resolvable:$true] %s3273
      %3279 = dma.vmem_to_hbm [thread:$0]  %s3272, 1024, %s3274, [#allocation4], 128, 128, 8
    $region53: #{tpu_custom_call.1} parent=1 // pred_fallthru
      _
    // Predicated region
    $region54: #{tpu_custom_call.1} parent=1 // pred_check
      _
    $region55: #{tpu_custom_call.1} parent=1 // pred_check_branch
      %3281 = sbr.rel (0) target = $region57
    $region56: #{tpu_custom_call.1} parent=1 // pred_region
      %3283 = dma.done [#allocation4], 1024
    $region57: #{tpu_custom_call.1} parent=1 // pred_fallthru
      _
    %3284 = vsyncpa [#allocation3], 1
    %3285 = vsyncpa [#allocation6], 1
    %3286 = vsyncpa [#allocation9], 1
    %3287 = vsyncpa [#allocation4], 1

</llo_original>
